<compile_context>
chip_gen: v5e
topology: v5e:2x2
jax: 0.10.0
libtpu: 0.0.40
codegen_flags: <defaults>
</compile_context>

<pallas_src>
import jax
import jax.numpy as jnp
from jax.experimental import pallas as pl
from jax.experimental.pallas import tpu as pltpu

LANE = 128  # TPU lane width; output feature dim padded to a lane-dense slab


def qnetwork_kernel(x_ref, w1_ref, b1_ref, w2_ref, b2_ref,
                    w3_ref, b3_ref, w4_ref, b4_ref, o_ref):
    # f32 x cast to bf16 in-kernel; bf16 weights on the MXU; f32 accumulation.
    x = x_ref[...].astype(jnp.bfloat16)
    h = jnp.dot(x, w1_ref[...],
                preferred_element_type=jnp.float32) + b1_ref[...]
    h = jnp.maximum(h, 0.0).astype(jnp.bfloat16)
    h = jnp.dot(h, w2_ref[...],
                preferred_element_type=jnp.float32) + b2_ref[...]
    h = jnp.maximum(h, 0.0).astype(jnp.bfloat16)
    h = jnp.dot(h, w3_ref[...],
                preferred_element_type=jnp.float32) + b3_ref[...]
    h = jnp.maximum(h, 0.0).astype(jnp.bfloat16)
    out = jnp.dot(h, w4_ref[...],
                  preferred_element_type=jnp.float32) + b4_ref[...]
    o_ref[...] = out.astype(o_ref.dtype)


def _round_up(n, m):
    return (n + m - 1) // m * m


def _cdiv(a, b):
    return (a + b - 1) // b


def prepare_qnetwork_params(params):
    """One-time param prep: bf16 weights, f32 biases, lane-padded output layer.

    Call once and reuse across forward calls (keeps per-call HBM traffic out of
    the wrapper). Returns (prepped_params, action_size).
    """
    action_size = params["w4"].shape[1]
    out_pad = _round_up(max(action_size, LANE), LANE)
    w4 = jnp.zeros((params["w4"].shape[0], out_pad), jnp.bfloat16)
    w4 = w4.at[:, :action_size].set(params["w4"].astype(jnp.bfloat16))
    b4 = jnp.zeros((1, out_pad), jnp.float32)
    b4 = b4.at[:, :action_size].set(params["b4"].astype(jnp.float32))
    prepped = {
        "w1": params["w1"].astype(jnp.bfloat16),
        "w2": params["w2"].astype(jnp.bfloat16),
        "w3": params["w3"].astype(jnp.bfloat16),
        "w4": w4,
        "b1": params["b1"].astype(jnp.float32),
        "b2": params["b2"].astype(jnp.float32),
        "b3": params["b3"].astype(jnp.float32),
        "b4": b4,
    }
    return prepped, action_size


def qnetwork_forward(x, prepped, action_size, *, batch_tile=1024,
                     out_dtype=jnp.bfloat16):
    """x: (B, state_size) f32. prepped: output of prepare_qnetwork_params."""
    B, state_size = x.shape
    out_pad = prepped["w4"].shape[1]

    # Batch tile: large (default 1024) to amortize per-step pipeline overhead,
    # multiple of 16 for bf16 sublane packing, and split so the grid has at
    # least 2 blocks (lets the "parallel" axis use both TCs on v7x).
    if B > batch_tile:
        tb = batch_tile
    else:
        tb = max(16, _round_up(_cdiv(B, 2), 16))
    num_blocks = max(2, _cdiv(B, tb))
    b_pad = num_blocks * tb
    if b_pad != B:
        x = jnp.pad(x, ((0, b_pad - B), (0, 0)))
    grid = (num_blocks,)

    # Full-array weight/bias blocks with a constant index_map -> DMA'd once,
    # VMEM-resident across all batch tiles.
    def weight_spec(a):
        return pl.BlockSpec(a.shape, lambda i: (0, 0))

    out = pl.pallas_call(
        qnetwork_kernel,
        out_shape=jax.ShapeDtypeStruct((b_pad, out_pad), out_dtype),
        grid_spec=pltpu.PrefetchScalarGridSpec(
            num_scalar_prefetch=0,
            grid=grid,
            in_specs=[
                pl.BlockSpec((tb, state_size), lambda i: (i, 0)),
                weight_spec(prepped["w1"]), weight_spec(prepped["b1"]),
                weight_spec(prepped["w2"]), weight_spec(prepped["b2"]),
                weight_spec(prepped["w3"]), weight_spec(prepped["b3"]),
                weight_spec(prepped["w4"]), weight_spec(prepped["b4"]),
            ],
            out_specs=pl.BlockSpec((tb, out_pad), lambda i: (i, 0)),
        ),
        compiler_params=pltpu.CompilerParams(
            dimension_semantics=("parallel",),
            # 32 MiB is a safe ceiling for v7x (64 MiB physical); at tb=1024 the
            # resident weights (~0.7 MiB bf16) + (tb,1024) f32 intermediate
            # (~4 MiB) + double-buffered x/out tiles fit comfortably. Could be
            # raised toward 48-64 MiB when targeting v5e/v6e only.
            vmem_limit_bytes=32 * 1024 * 1024,
        ),
    )(x, prepped["w1"], prepped["b1"], prepped["w2"], prepped["b2"],
      prepped["w3"], prepped["b3"], prepped["w4"], prepped["b4"])

    return out[:B, :action_size]


def init_qnetwork_params(key, state_size, action_size,
                         fc1_units=1024, fc2_units=256, fc3_units=128):
    """Mimics PyTorch nn.Linear default init: U(-1/sqrt(fan_in), 1/sqrt(fan_in))."""
    dims = [state_size, fc1_units, fc2_units, fc3_units, action_size]
    params = {}
    keys = jax.random.split(key, 8)
    for i in range(4):
        fan_in, fan_out = dims[i], dims[i + 1]
        bound = 1.0 / (fan_in ** 0.5)
        params[f"w{i + 1}"] = jax.random.uniform(
            keys[2 * i], (fan_in, fan_out), jnp.float32, minval=-bound, maxval=bound)
        params[f"b{i + 1}"] = jax.random.uniform(
            keys[2 * i + 1], (1, fan_out), jnp.float32, minval=-bound, maxval=bound)
    return params


def qnetwork_reference_f32(x, params):
    h = jnp.maximum(x @ params["w1"] + params["b1"], 0.0)
    h = jnp.maximum(h @ params["w2"] + params["b2"], 0.0)
    h = jnp.maximum(h @ params["w3"] + params["b3"], 0.0)
    return h @ params["w4"] + params["b4"]


def qnetwork_reference_bf16(x, params):
    # Mirrors the kernel's dtype plan: bf16 inputs/weights, f32 accumulation.
    def layer(h, w, b, relu):
        y = jnp.dot(h, w.astype(jnp.bfloat16),
                    preferred_element_type=jnp.float32) + b
        return jnp.maximum(y, 0.0).astype(jnp.bfloat16) if relu else y
    h = layer(x.astype(jnp.bfloat16), params["w1"], params["b1"], True)
    h = layer(h, params["w2"], params["b2"], True)
    h = layer(h, params["w3"], params["b3"], True)
    return layer(h, params["w4"], params["b4"], False)


if __name__ == "__main__":
    key = jax.random.PRNGKey(0)
    k_param, k_x = jax.random.split(key)

    state_size = 32
    action_size = 4
    batch = 8

    params = init_qnetwork_params(k_param, state_size, action_size)
    prepped, act_size = prepare_qnetwork_params(params)
    x = jax.random.normal(k_x, (batch, state_size), jnp.float32)

    out = qnetwork_forward(x, prepped, act_size)
    out = jax.block_until_ready(out)
    assert out.shape == (batch, action_size)

    out_f32 = out.astype(jnp.float32)
    ref_bf16 = qnetwork_reference_bf16(x, params)
    ref_f32 = qnetwork_reference_f32(x, params)
    assert jnp.allclose(out_f32, ref_bf16, atol=2e-2, rtol=2e-2)
    assert jnp.allclose(out_f32, ref_f32, atol=5e-2, rtol=5e-2)

    print("KERNEL_OK")
</pallas_src>

<mosaic_0001>
module attributes {stable_mosaic.version = 11 : i64} {
  func.func @qnetwork_kernel(%arg0: i32, %arg1: memref<16x32xf32, #tpu.memory_space<vmem>>, %arg2: memref<32x1024xbf16, #tpu.memory_space<vmem>>, %arg3: memref<1x1024xf32, #tpu.memory_space<vmem>>, %arg4: memref<1024x256xbf16, #tpu.memory_space<vmem>>, %arg5: memref<1x256xf32, #tpu.memory_space<vmem>>, %arg6: memref<256x128xbf16, #tpu.memory_space<vmem>>, %arg7: memref<1x128xf32, #tpu.memory_space<vmem>>, %arg8: memref<128x128xbf16, #tpu.memory_space<vmem>>, %arg9: memref<1x128xf32, #tpu.memory_space<vmem>>, %arg10: memref<16x128xbf16, #tpu.memory_space<vmem>>) attributes {dimension_semantics = [#tpu.dimension_semantics<parallel>], iteration_bounds = array<i64: 2>, scalar_prefetch = 0 : i64, scratch_operands = 0 : i64, tpu.core_type = #tpu.core_type<tc>, window_params = [{transform_indices = @transform_0, window_bounds = array<i64: 16, 32>}, {pipeline_mode = #tpu.pipeline_mode<synchronous>, transform_indices = @transform_1, window_bounds = array<i64: 32, 1024>}, {pipeline_mode = #tpu.pipeline_mode<synchronous>, transform_indices = @transform_2, window_bounds = array<i64: 1, 1024>}, {pipeline_mode = #tpu.pipeline_mode<synchronous>, transform_indices = @transform_3, window_bounds = array<i64: 1024, 256>}, {pipeline_mode = #tpu.pipeline_mode<synchronous>, transform_indices = @transform_4, window_bounds = array<i64: 1, 256>}, {pipeline_mode = #tpu.pipeline_mode<synchronous>, transform_indices = @transform_5, window_bounds = array<i64: 256, 128>}, {pipeline_mode = #tpu.pipeline_mode<synchronous>, transform_indices = @transform_6, window_bounds = array<i64: 1, 128>}, {pipeline_mode = #tpu.pipeline_mode<synchronous>, transform_indices = @transform_7, window_bounds = array<i64: 128, 128>}, {pipeline_mode = #tpu.pipeline_mode<synchronous>, transform_indices = @transform_8, window_bounds = array<i64: 1, 128>}, {transform_indices = @transform_9, window_bounds = array<i64: 16, 128>}]} {
    %c0 = arith.constant 0 : index
    %c0_0 = arith.constant 0 : index
    %0 = vector.load %arg1[%c0, %c0_0] : memref<16x32xf32, #tpu.memory_space<vmem>>, vector<16x32xf32>
    %1 = arith.truncf %0 : vector<16x32xf32> to vector<16x32xbf16>
    %c0_1 = arith.constant 0 : index
    %c0_2 = arith.constant 0 : index
    %2 = vector.load %arg2[%c0_1, %c0_2] : memref<32x1024xbf16, #tpu.memory_space<vmem>>, vector<32x1024xbf16>
    %cst = arith.constant dense<0.000000e+00> : vector<16x1024xf32>
    %3 = tpu.matmul %1, %2, %cst {dimension_numbers = #tpu.dot_dimension_numbers<[1], [0], [0], [1], [0, 0, 1, 1], [], []>} : vector<16x32xbf16>, vector<32x1024xbf16>, vector<16x1024xf32> -> vector<16x1024xf32>
    %c0_3 = arith.constant 0 : index
    %c0_4 = arith.constant 0 : index
    %4 = vector.load %arg3[%c0_3, %c0_4] : memref<1x1024xf32, #tpu.memory_space<vmem>>, vector<1x1024xf32>
    %5 = vector.broadcast %4 : vector<1x1024xf32> to vector<16x1024xf32>
    %6 = arith.addf %3, %5 : vector<16x1024xf32>
    %cst_5 = arith.constant 0.000000e+00 : f32
    %7 = vector.broadcast %cst_5 : f32 to vector<16x1024xf32>
    %8 = arith.maximumf %6, %7 : vector<16x1024xf32>
    %9 = arith.truncf %8 : vector<16x1024xf32> to vector<16x1024xbf16>
    %c0_6 = arith.constant 0 : index
    %c0_7 = arith.constant 0 : index
    %10 = vector.load %arg4[%c0_6, %c0_7] : memref<1024x256xbf16, #tpu.memory_space<vmem>>, vector<1024x256xbf16>
    %cst_8 = arith.constant dense<0.000000e+00> : vector<16x256xf32>
    %11 = tpu.matmul %9, %10, %cst_8 {dimension_numbers = #tpu.dot_dimension_numbers<[1], [0], [0], [1], [0, 0, 1, 1], [], []>} : vector<16x1024xbf16>, vector<1024x256xbf16>, vector<16x256xf32> -> vector<16x256xf32>
    %c0_9 = arith.constant 0 : index
    %c0_10 = arith.constant 0 : index
    %12 = vector.load %arg5[%c0_9, %c0_10] : memref<1x256xf32, #tpu.memory_space<vmem>>, vector<1x256xf32>
    %13 = vector.broadcast %12 : vector<1x256xf32> to vector<16x256xf32>
    %14 = arith.addf %11, %13 : vector<16x256xf32>
    %cst_11 = arith.constant 0.000000e+00 : f32
    %15 = vector.broadcast %cst_11 : f32 to vector<16x256xf32>
    %16 = arith.maximumf %14, %15 : vector<16x256xf32>
    %17 = arith.truncf %16 : vector<16x256xf32> to vector<16x256xbf16>
    %c0_12 = arith.constant 0 : index
    %c0_13 = arith.constant 0 : index
    %18 = vector.load %arg6[%c0_12, %c0_13] : memref<256x128xbf16, #tpu.memory_space<vmem>>, vector<256x128xbf16>
    %cst_14 = arith.constant dense<0.000000e+00> : vector<16x128xf32>
    %19 = tpu.matmul %17, %18, %cst_14 {dimension_numbers = #tpu.dot_dimension_numbers<[1], [0], [0], [1], [0, 0, 1, 1], [], []>} : vector<16x256xbf16>, vector<256x128xbf16>, vector<16x128xf32> -> vector<16x128xf32>
    %c0_15 = arith.constant 0 : index
    %c0_16 = arith.constant 0 : index
    %20 = vector.load %arg7[%c0_15, %c0_16] : memref<1x128xf32, #tpu.memory_space<vmem>>, vector<1x128xf32>
    %21 = vector.broadcast %20 : vector<1x128xf32> to vector<16x128xf32>
    %22 = arith.addf %19, %21 : vector<16x128xf32>
    %cst_17 = arith.constant 0.000000e+00 : f32
    %23 = vector.broadcast %cst_17 : f32 to vector<16x128xf32>
    %24 = arith.maximumf %22, %23 : vector<16x128xf32>
    %25 = arith.truncf %24 : vector<16x128xf32> to vector<16x128xbf16>
    %c0_18 = arith.constant 0 : index
    %c0_19 = arith.constant 0 : index
    %26 = vector.load %arg8[%c0_18, %c0_19] : memref<128x128xbf16, #tpu.memory_space<vmem>>, vector<128x128xbf16>
    %cst_20 = arith.constant dense<0.000000e+00> : vector<16x128xf32>
    %27 = tpu.matmul %25, %26, %cst_20 {dimension_numbers = #tpu.dot_dimension_numbers<[1], [0], [0], [1], [0, 0, 1, 1], [], []>} : vector<16x128xbf16>, vector<128x128xbf16>, vector<16x128xf32> -> vector<16x128xf32>
    %c0_21 = arith.constant 0 : index
    %c0_22 = arith.constant 0 : index
    %28 = vector.load %arg9[%c0_21, %c0_22] : memref<1x128xf32, #tpu.memory_space<vmem>>, vector<1x128xf32>
    %29 = vector.broadcast %28 : vector<1x128xf32> to vector<16x128xf32>
    %30 = arith.addf %27, %29 : vector<16x128xf32>
    %31 = arith.truncf %30 : vector<16x128xf32> to vector<16x128xbf16>
    %c0_23 = arith.constant 0 : index
    %c0_24 = arith.constant 0 : index
    %32 = vector.load %arg10[%c0_23, %c0_24] : memref<16x128xbf16, #tpu.memory_space<vmem>>, vector<16x128xbf16>
    tpu.vector_store %arg10[%c0_23, %c0_24], %31 {strides = array<i32>} : memref<16x128xbf16, #tpu.memory_space<vmem>>, vector<16x128xbf16>,
    return
  }
  func.func @transform_0(%arg0: i32) -> (i32, i32) {
    %c0_i32 = arith.constant 0 : i32
    %c0_i32_0 = arith.constant 0 : i32
    return %arg0, %c0_i32 : i32, i32
  }
  func.func @transform_1(%arg0: i32) -> (i32, i32) {
    %c0_i32 = arith.constant 0 : i32
    %c0_i32_0 = arith.constant 0 : i32
    %c0_i32_1 = arith.constant 0 : i32
    return %c0_i32, %c0_i32_0 : i32, i32
  }
  func.func @transform_2(%arg0: i32) -> (i32, i32) {
    %c0_i32 = arith.constant 0 : i32
    %c0_i32_0 = arith.constant 0 : i32
    %c0_i32_1 = arith.constant 0 : i32
    return %c0_i32, %c0_i32_0 : i32, i32
  }
  func.func @transform_3(%arg0: i32) -> (i32, i32) {
    %c0_i32 = arith.constant 0 : i32
    %c0_i32_0 = arith.constant 0 : i32
    %c0_i32_1 = arith.constant 0 : i32
    return %c0_i32, %c0_i32_0 : i32, i32
  }
  func.func @transform_4(%arg0: i32) -> (i32, i32) {
    %c0_i32 = arith.constant 0 : i32
    %c0_i32_0 = arith.constant 0 : i32
    %c0_i32_1 = arith.constant 0 : i32
    return %c0_i32, %c0_i32_0 : i32, i32
  }
  func.func @transform_5(%arg0: i32) -> (i32, i32) {
    %c0_i32 = arith.constant 0 : i32
    %c0_i32_0 = arith.constant 0 : i32
    %c0_i32_1 = arith.constant 0 : i32
    return %c0_i32, %c0_i32_0 : i32, i32
  }
  func.func @transform_6(%arg0: i32) -> (i32, i32) {
    %c0_i32 = arith.constant 0 : i32
    %c0_i32_0 = arith.constant 0 : i32
    %c0_i32_1 = arith.constant 0 : i32
    return %c0_i32, %c0_i32_0 : i32, i32
  }
  func.func @transform_7(%arg0: i32) -> (i32, i32) {
    %c0_i32 = arith.constant 0 : i32
    %c0_i32_0 = arith.constant 0 : i32
    %c0_i32_1 = arith.constant 0 : i32
    return %c0_i32, %c0_i32_0 : i32, i32
  }
  func.func @transform_8(%arg0: i32) -> (i32, i32) {
    %c0_i32 = arith.constant 0 : i32
    %c0_i32_0 = arith.constant 0 : i32
    %c0_i32_1 = arith.constant 0 : i32
    return %c0_i32, %c0_i32_0 : i32, i32
  }
  func.func @transform_9(%arg0: i32) -> (i32, i32) {
    %c0_i32 = arith.constant 0 : i32
    %c0_i32_0 = arith.constant 0 : i32
    return %arg0, %c0_i32 : i32, i32
  }
}

</mosaic_0001>

<llo_original>
// kernel: tpu_custom_call.1
$region0: #{tpu_custom_call.1}
  #allocation0 [shape = 'u32[]', space=smem, size = 0x4, offset = 0x4, fixed_abs, tag = 'smem constant byte address 0x4 - core index']
  #allocation1 [shape = 'u32[72,128]{1,0:T(1,128)}', space=vmem, size = 0x9000, scoped, tag = 'internal scratch']
  %s0 = inlined_call_operand.hbm [shape: f32[32,32], index: 0, kind: input, shape index: {}]
  %s1 = inlined_call_operand.hbm [shape: bf16[32,1024], index: 1, kind: input, shape index: {}]
  %s2 = inlined_call_operand.hbm [shape: f32[1,1024], index: 2, kind: input, shape index: {}]
  %s3 = inlined_call_operand.hbm [shape: bf16[1024,256], index: 3, kind: input, shape index: {}]
  %s4 = inlined_call_operand.vmem [shape: f32[1,256], index: 4, kind: input, shape index: {}]
  %s5 = inlined_call_operand.hbm [shape: bf16[256,128], index: 5, kind: input, shape index: {}]
  %s6 = inlined_call_operand.vmem [shape: f32[1,128], index: 6, kind: input, shape index: {}]
  %s7 = inlined_call_operand.hbm [shape: bf16[128,128], index: 7, kind: input, shape index: {}]
  %s8 = inlined_call_operand.vmem [shape: f32[1,128], index: 8, kind: input, shape index: {}]
  %s9 = inlined_call_operand.hbm [shape: bf16[32,128], index: 9, kind: output, shape index: {}]
  %s10 = sld [smem:[#allocation0]]
  $region93: #{tpu_custom_call.1} parent=0
    _
  %s12 = ssub.s32 1, %s10
  %s13 = scalar_select 0, %s12, %s10
  $region1: #{tpu_custom_call.1} parent=0
    #allocation2 [shape = 'u8[16384]{0}', space=vmem, size = 0x4000, scoped, tag = 'input window, operand 0']
    #allocation3 [shape = 's32[2]{0}', space=sflag, size = 0x8, scoped, tag = 'scoped memory for tpu_custom_call.1']
    #allocation4 [shape = 's32[2]{0}', space=sflag, size = 0x8, scoped, tag = 'scoped memory for tpu_custom_call.1']
    #allocation5 [shape = 'u8[65536]{0}', space=vmem, size = 0x10000, scoped, tag = 'input window, operand 1, single buffered']
    #allocation6 [shape = 's32[1]{0}', space=sflag, size = 0x4, scoped, tag = 'scoped memory for tpu_custom_call.1']
    #allocation7 [shape = 'u8[4096]{0}', space=vmem, size = 0x1000, scoped, tag = 'input window, operand 2, single buffered']
    #allocation8 [shape = 'u8[524288]{0}', space=vmem, size = 0x80000, scoped, tag = 'input window, operand 3, single buffered']
    #allocation9 [shape = 's32[1]{0}', space=sflag, size = 0x4, scoped, tag = 'scoped memory for tpu_custom_call.1']
    #allocation10 [shape = 'u8[65536]{0}', space=vmem, size = 0x10000, scoped, tag = 'input window, operand 5, single buffered']
    #allocation11 [shape = 'u8[32768]{0}', space=vmem, size = 0x8000, scoped, tag = 'input window, operand 7, single buffered']
    #allocation12 [shape = 's32[1]{0}', space=sflag, size = 0x4, scoped, tag = 'scoped memory for tpu_custom_call.1']
    #allocation13 [shape = 'u8[8192]{0}', space=vmem, size = 0x2000, scoped, tag = 'output window, operand 0']
    %14 = vsyncpa [#allocation3], 0
    %s15 = scalar_lea.sflag [#allocation3], 1
    %16 = vsyncpa %s15, 0
    %17 = vsyncpa [#allocation6], 0
    %18 = vsyncpa [#allocation9], 0
    %19 = vsyncpa [#allocation12], 0
    %20 = vsyncpa [#allocation4], 0
    %s21 = scalar_lea.sflag [#allocation4], 1
    %22 = vsyncpa %s21, 0
    loop: start=0, step=1, limit=4
    $region2: #{tpu_custom_call.1} parent=1 // loop_pre_header
      _
    $region3: #{tpu_custom_call.1} parent=1 // loop_header
      %s24 = sphi 0, %s28
      %p25 = scmp.ge.s32.totalorder %s24, 4
      %s34 = sphi 0, %s36
      %s37 = sphi 0, %s34
      %s38 = sphi 0, %s37
      %s54 = sphi 0, %s38
      %s58 = sphi 0, %s58
      %s60 = sphi 0, %s58
      %s61 = sphi 0, %s60
      %s75 = sphi 0, %s61
      %s79 = sphi 0, %s79
      %s81 = sphi 0, %s79
      %s82 = sphi 0, %s81
      %s96 = sphi 0, %s82
      %s100 = sphi 0, %s100
      %s102 = sphi 0, %s100
      %s103 = sphi 0, %s102
      %s117 = sphi 0, %s103
      %s121 = sphi 0, %s121
      %s123 = sphi 0, %s121
      %s124 = sphi 0, %s123
      %s138 = sphi 0, %s124
      %s142 = sphi 0, %s142
      %s144 = sphi 0, %s142
      %s145 = sphi 0, %s144
      %s159 = sphi 0, %s145
      %s163 = sphi 0, %s163
      %s165 = sphi 0, %s163
      %s166 = sphi 0, %s165
      %s180 = sphi 0, %s166
      %s184 = sphi 0, %s184
      %s186 = sphi 0, %s184
      %s187 = sphi 0, %s186
      %s201 = sphi 0, %s187
      %s205 = sphi 0, %s205
      %s207 = sphi 0, %s205
      %s208 = sphi 0, %s207
      %s222 = sphi 0, %s208
      %s228 = sphi 0, %s230
      %s231 = sphi 0, %s228
      %s232 = sphi 0, %s231
      %s248 = sphi 0, %s232
    $region4: #{tpu_custom_call.1} parent=1 // loop_header_branch
      %27 = sbr.rel (%p25) target = $region8
    $region5: #{tpu_custom_call.1} parent=1 // loop_body
      %s29 = ssub.s32 %s24, 1
      %s30 = ssub.s32 %s24, 2
      %s31 = sadd.s32 %s24, 1
      %s32 = ssub.s32 %s24, %s31
      %p33 = scmp.eq.s32.totalorder %s32, 0
      %s35 = sadd.s32 %s34, 1
      %s36 = scalar_select %p33, %s34, %s35
      %p39 = pneg %p33
      %p40 = scmp.eq.s32.totalorder %s24, 1
      %p41 = por %p39, %p40
      %p42 = scmp.ne.s32.totalorder %s34, %s37
      %p43 = scmp.eq.s32.totalorder %s24, 0
      %p44 = por %p42, %p43
      %p45 = scmp.ne.s32.totalorder %s34, %s37
      %p46 = scmp.eq.s32.totalorder %s29, 1
      %p47 = por %p45, %p46
      %p48 = scmp.ne.s32.totalorder %s37, %s38
      %p49 = scmp.eq.s32.totalorder %s29, 0
      %p50 = por %p48, %p49
      %p51 = scmp.ne.s32.totalorder %s37, %s38
      %p52 = scmp.eq.s32.totalorder %s30, 1
      %p53 = por %p51, %p52
      %p55 = scmp.ne.s32.totalorder %s38, %s54
      %p56 = scmp.eq.s32.totalorder %s30, 0
      %p57 = por %p55, %p56
      %s59 = sadd.s32 %s58, 1
      %p62 = scmp.eq.s32.totalorder %s24, 1
      %p63 = scmp.ne.s32.totalorder %s58, %s60
      %p64 = scmp.eq.s32.totalorder %s24, 0
      %p65 = por %p63, %p64
      %p66 = scmp.ne.s32.totalorder %s58, %s60
      %p67 = scmp.eq.s32.totalorder %s29, 1
      %p68 = por %p66, %p67
      %p69 = scmp.ne.s32.totalorder %s60, %s61
      %p70 = scmp.eq.s32.totalorder %s29, 0
      %p71 = por %p69, %p70
      %p72 = scmp.ne.s32.totalorder %s60, %s61
      %p73 = scmp.eq.s32.totalorder %s30, 1
      %p74 = por %p72, %p73
      %p76 = scmp.ne.s32.totalorder %s61, %s75
      %p77 = scmp.eq.s32.totalorder %s30, 0
      %p78 = por %p76, %p77
      %s80 = sadd.s32 %s79, 1
      %p83 = scmp.eq.s32.totalorder %s24, 1
      %p84 = scmp.ne.s32.totalorder %s79, %s81
      %p85 = scmp.eq.s32.totalorder %s24, 0
      %p86 = por %p84, %p85
      %p87 = scmp.ne.s32.totalorder %s79, %s81
      %p88 = scmp.eq.s32.totalorder %s29, 1
      %p89 = por %p87, %p88
      %p90 = scmp.ne.s32.totalorder %s81, %s82
      %p91 = scmp.eq.s32.totalorder %s29, 0
      %p92 = por %p90, %p91
      %p93 = scmp.ne.s32.totalorder %s81, %s82
      %p94 = scmp.eq.s32.totalorder %s30, 1
      %p95 = por %p93, %p94
      %p97 = scmp.ne.s32.totalorder %s82, %s96
      %p98 = scmp.eq.s32.totalorder %s30, 0
      %p99 = por %p97, %p98
      %s101 = sadd.s32 %s100, 1
      %p104 = scmp.eq.s32.totalorder %s24, 1
      %p105 = scmp.ne.s32.totalorder %s100, %s102
      %p106 = scmp.eq.s32.totalorder %s24, 0
      %p107 = por %p105, %p106
      %p108 = scmp.ne.s32.totalorder %s100, %s102
      %p109 = scmp.eq.s32.totalorder %s29, 1
      %p110 = por %p108, %p109
      %p111 = scmp.ne.s32.totalorder %s102, %s103
      %p112 = scmp.eq.s32.totalorder %s29, 0
      %p113 = por %p111, %p112
      %p114 = scmp.ne.s32.totalorder %s102, %s103
      %p115 = scmp.eq.s32.totalorder %s30, 1
      %p116 = por %p114, %p115
      %p118 = scmp.ne.s32.totalorder %s103, %s117
      %p119 = scmp.eq.s32.totalorder %s30, 0
      %p120 = por %p118, %p119
      %s122 = sadd.s32 %s121, 1
      %p125 = scmp.eq.s32.totalorder %s24, 1
      %p126 = scmp.ne.s32.totalorder %s121, %s123
      %p127 = scmp.eq.s32.totalorder %s24, 0
      %p128 = por %p126, %p127
      %p129 = scmp.ne.s32.totalorder %s121, %s123
      %p130 = scmp.eq.s32.totalorder %s29, 1
      %p131 = por %p129, %p130
      %p132 = scmp.ne.s32.totalorder %s123, %s124
      %p133 = scmp.eq.s32.totalorder %s29, 0
      %p134 = por %p132, %p133
      %p135 = scmp.ne.s32.totalorder %s123, %s124
      %p136 = scmp.eq.s32.totalorder %s30, 1
      %p137 = por %p135, %p136
      %p139 = scmp.ne.s32.totalorder %s124, %s138
      %p140 = scmp.eq.s32.totalorder %s30, 0
      %p141 = por %p139, %p140
      %s143 = sadd.s32 %s142, 1
      %p146 = scmp.eq.s32.totalorder %s24, 1
      %p147 = scmp.ne.s32.totalorder %s142, %s144
      %p148 = scmp.eq.s32.totalorder %s24, 0
      %p149 = por %p147, %p148
      %p150 = scmp.ne.s32.totalorder %s142, %s144
      %p151 = scmp.eq.s32.totalorder %s29, 1
      %p152 = por %p150, %p151
      %p153 = scmp.ne.s32.totalorder %s144, %s145
      %p154 = scmp.eq.s32.totalorder %s29, 0
      %p155 = por %p153, %p154
      %p156 = scmp.ne.s32.totalorder %s144, %s145
      %p157 = scmp.eq.s32.totalorder %s30, 1
      %p158 = por %p156, %p157
      %p160 = scmp.ne.s32.totalorder %s145, %s159
      %p161 = scmp.eq.s32.totalorder %s30, 0
      %p162 = por %p160, %p161
      %s164 = sadd.s32 %s163, 1
      %p167 = scmp.eq.s32.totalorder %s24, 1
      %p168 = scmp.ne.s32.totalorder %s163, %s165
      %p169 = scmp.eq.s32.totalorder %s24, 0
      %p170 = por %p168, %p169
      %p171 = scmp.ne.s32.totalorder %s163, %s165
      %p172 = scmp.eq.s32.totalorder %s29, 1
      %p173 = por %p171, %p172
      %p174 = scmp.ne.s32.totalorder %s165, %s166
      %p175 = scmp.eq.s32.totalorder %s29, 0
      %p176 = por %p174, %p175
      %p177 = scmp.ne.s32.totalorder %s165, %s166
      %p178 = scmp.eq.s32.totalorder %s30, 1
      %p179 = por %p177, %p178
      %p181 = scmp.ne.s32.totalorder %s166, %s180
      %p182 = scmp.eq.s32.totalorder %s30, 0
      %p183 = por %p181, %p182
      %s185 = sadd.s32 %s184, 1
      %p188 = scmp.eq.s32.totalorder %s24, 1
      %p189 = scmp.ne.s32.totalorder %s184, %s186
      %p190 = scmp.eq.s32.totalorder %s24, 0
      %p191 = por %p189, %p190
      %p192 = scmp.ne.s32.totalorder %s184, %s186
      %p193 = scmp.eq.s32.totalorder %s29, 1
      %p194 = por %p192, %p193
      %p195 = scmp.ne.s32.totalorder %s186, %s187
      %p196 = scmp.eq.s32.totalorder %s29, 0
      %p197 = por %p195, %p196
      %p198 = scmp.ne.s32.totalorder %s186, %s187
      %p199 = scmp.eq.s32.totalorder %s30, 1
      %p200 = por %p198, %p199
      %p202 = scmp.ne.s32.totalorder %s187, %s201
      %p203 = scmp.eq.s32.totalorder %s30, 0
      %p204 = por %p202, %p203
      %s206 = sadd.s32 %s205, 1
      %p209 = scmp.eq.s32.totalorder %s24, 1
      %p210 = scmp.ne.s32.totalorder %s205, %s207
      %p211 = scmp.eq.s32.totalorder %s24, 0
      %p212 = por %p210, %p211
      %p213 = scmp.ne.s32.totalorder %s205, %s207
      %p214 = scmp.eq.s32.totalorder %s29, 1
      %p215 = por %p213, %p214
      %p216 = scmp.ne.s32.totalorder %s207, %s208
      %p217 = scmp.eq.s32.totalorder %s29, 0
      %p218 = por %p216, %p217
      %p219 = scmp.ne.s32.totalorder %s207, %s208
      %p220 = scmp.eq.s32.totalorder %s30, 1
      %p221 = por %p219, %p220
      %p223 = scmp.ne.s32.totalorder %s208, %s222
      %p224 = scmp.eq.s32.totalorder %s30, 0
      %p225 = por %p223, %p224
      %s226 = ssub.s32 %s24, %s31
      %p227 = scmp.eq.s32.totalorder %s226, 0
      %s229 = sadd.s32 %s228, 1
      %s230 = scalar_select %p227, %s228, %s229
      %p233 = pneg %p227
      %p234 = scmp.eq.s32.totalorder %s24, 1
      %p235 = por %p233, %p234
      %p236 = scmp.ne.s32.totalorder %s228, %s231
      %p237 = scmp.eq.s32.totalorder %s24, 0
      %p238 = por %p236, %p237
      %p239 = scmp.ne.s32.totalorder %s228, %s231
      %p240 = scmp.eq.s32.totalorder %s29, 1
      %p241 = por %p239, %p240
      %p242 = scmp.ne.s32.totalorder %s231, %s232
      %p243 = scmp.eq.s32.totalorder %s29, 0
      %p244 = por %p242, %p243
      %p245 = scmp.ne.s32.totalorder %s231, %s232
      %p246 = scmp.eq.s32.totalorder %s30, 1
      %p247 = por %p245, %p246
      %p249 = scmp.ne.s32.totalorder %s232, %s248
      %p250 = scmp.eq.s32.totalorder %s30, 0
      %p251 = por %p249, %p250
      %p252 = scmp.le.s32.totalorder 1, %s24
      %p253 = scmp.lt.s32.totalorder %s24, 3
      %p254 = pnand %p252, %p253
      %p255 = pneg %p254
      // Predicated region
      $region9: #{tpu_custom_call.1} parent=5 // pred_check
        _
      $region10: #{tpu_custom_call.1} parent=5 // pred_check_branch
        %257 = sbr.rel (%p254) target = $region12
      $region11: #{tpu_custom_call.1} parent=5 // pred_region
        %s258 = ssub.s32 %s24, 1
        // Predicated region
        $region13: #{tpu_custom_call.1} parent=11 // pred_check
          %p259 = pneg %p71
        $region14: #{tpu_custom_call.1} parent=11 // pred_check_branch
          %261 = sbr.rel (%p259) target = $region16
        $region15: #{tpu_custom_call.1} parent=11 // pred_region
          %263 = vsyncadd [#allocation6], 0
          %s264 = sshll.u32 %s1, 4
          %s265 = int_to_ptr.hbm [resolvable:$true] %s264
          %s266 = sshll.u32 [#allocation5], 4
          %s267 = int_to_ptr.vmem [resolvable:$true] %s266
          %272 = dma.hbm_to_vmem [thread:$0]  %s265, 2048, %s267, [#allocation6], 512, 512, 32
        $region16: #{tpu_custom_call.1} parent=11 // pred_fallthru
          _
        // Predicated region
        $region17: #{tpu_custom_call.1} parent=11 // pred_check
          %p273 = pneg %p92
        $region18: #{tpu_custom_call.1} parent=11 // pred_check_branch
          %275 = sbr.rel (%p273) target = $region20
        $region19: #{tpu_custom_call.1} parent=11 // pred_region
          %277 = vsyncadd [#allocation6], 0
          %s279 = sshll.u32 %s2, 4
          %s280 = int_to_ptr.hbm [resolvable:$true] %s279
          %s281 = sshll.u32 [#allocation7], 4
          %s282 = int_to_ptr.vmem [resolvable:$true] %s281
          %284 = dma.hbm_to_vmem [thread:$0]  %s280, 128, %s282, [#allocation6]
        $region20: #{tpu_custom_call.1} parent=11 // pred_fallthru
          _
        // Predicated region
        $region21: #{tpu_custom_call.1} parent=11 // pred_check
          %p285 = pneg %p113
        $region22: #{tpu_custom_call.1} parent=11 // pred_check_branch
          %287 = sbr.rel (%p285) target = $region24
        $region23: #{tpu_custom_call.1} parent=11 // pred_region
          %289 = vsyncadd [#allocation9], 0
          %s290 = sshll.u32 %s3, 4
          %s291 = int_to_ptr.hbm [resolvable:$true] %s290
          %s292 = sshll.u32 [#allocation8], 4
          %s293 = int_to_ptr.vmem [resolvable:$true] %s292
          %298 = dma.hbm_to_vmem [thread:$0]  %s291, 16384, %s293, [#allocation9], 128, 128, 8
        $region24: #{tpu_custom_call.1} parent=11 // pred_fallthru
          _
        // Predicated region
        $region25: #{tpu_custom_call.1} parent=11 // pred_check
          %p299 = pneg %p134
        $region26: #{tpu_custom_call.1} parent=11 // pred_check_branch
          %301 = sbr.rel (%p299) target = $region28
        $region27: #{tpu_custom_call.1} parent=11 // pred_region
          _
        $region28: #{tpu_custom_call.1} parent=11 // pred_fallthru
          _
        // Predicated region
        $region29: #{tpu_custom_call.1} parent=11 // pred_check
          %p302 = pneg %p155
        $region30: #{tpu_custom_call.1} parent=11 // pred_check_branch
          %304 = sbr.rel (%p302) target = $region32
        $region31: #{tpu_custom_call.1} parent=11 // pred_region
          %306 = vsyncadd [#allocation9], 0
          %s307 = sshll.u32 %s5, 4
          %s308 = int_to_ptr.hbm [resolvable:$true] %s307
          %s309 = sshll.u32 [#allocation10], 4
          %s310 = int_to_ptr.vmem [resolvable:$true] %s309
          %315 = dma.hbm_to_vmem [thread:$0]  %s308, 2048, %s310, [#allocation9], 64, 64, 4
        $region32: #{tpu_custom_call.1} parent=11 // pred_fallthru
          _
        // Predicated region
        $region33: #{tpu_custom_call.1} parent=11 // pred_check
          %p316 = pneg %p176
        $region34: #{tpu_custom_call.1} parent=11 // pred_check_branch
          %318 = sbr.rel (%p316) target = $region36
        $region35: #{tpu_custom_call.1} parent=11 // pred_region
          _
        $region36: #{tpu_custom_call.1} parent=11 // pred_fallthru
          _
        // Predicated region
        $region37: #{tpu_custom_call.1} parent=11 // pred_check
          %p319 = pneg %p197
        $region38: #{tpu_custom_call.1} parent=11 // pred_check_branch
          %321 = sbr.rel (%p319) target = $region40
        $region39: #{tpu_custom_call.1} parent=11 // pred_region
          %323 = vsyncadd [#allocation12], 0
          %s324 = sshll.u32 %s7, 4
          %s325 = int_to_ptr.hbm [resolvable:$true] %s324
          %s326 = sshll.u32 [#allocation11], 4
          %s327 = int_to_ptr.vmem [resolvable:$true] %s326
          %332 = dma.hbm_to_vmem [thread:$0]  %s325, 1024, %s327, [#allocation12], 64, 64, 4
        $region40: #{tpu_custom_call.1} parent=11 // pred_fallthru
          _
        // Predicated region
        $region41: #{tpu_custom_call.1} parent=11 // pred_check
          %p333 = pneg %p218
        $region42: #{tpu_custom_call.1} parent=11 // pred_check_branch
          %335 = sbr.rel (%p333) target = $region44
        $region43: #{tpu_custom_call.1} parent=11 // pred_region
          _
        $region44: #{tpu_custom_call.1} parent=11 // pred_fallthru
          _
      $region12: #{tpu_custom_call.1} parent=5 // pred_fallthru
        _
      %p336 = scmp.lt.s32.totalorder %s24, 2
      // Predicated region
      $region45: #{tpu_custom_call.1} parent=5 // pred_check
        %p337 = pneg %p336
      $region46: #{tpu_custom_call.1} parent=5 // pred_check_branch
        %339 = sbr.rel (%p337) target = $region48
      $region47: #{tpu_custom_call.1} parent=5 // pred_region
        // Predicated region
        $region49: #{tpu_custom_call.1} parent=47 // pred_check
          %p340 = pneg %p44
        $region50: #{tpu_custom_call.1} parent=47 // pred_check_branch
          %342 = sbr.rel (%p340) target = $region52
        $region51: #{tpu_custom_call.1} parent=47 // pred_region
          %s343 = sand.u32 %s34, 1
          %s344 = scalar_lea.sflag [#allocation3], %s343
          %s345 = sand.u32 %s34, 1
          %s346 = smul.addr %s345, 16
          %s347 = scalar_lea.vmem [#allocation2], %s346
          %s348 = smul.u32 2, %s24
          %350 = vsyncadd %s344, 0
          %s351 = smul.addr %s348, 8
          %s352 = scalar_lea.hbm %s0, %s351
          %s353 = sshll.u32 %s352, 4
          %s354 = int_to_ptr.hbm [resolvable:$true] %s353
          %s355 = sshll.u32 %s347, 4
          %s356 = int_to_ptr.vmem [resolvable:$true] %s355
          %361 = dma.hbm_to_vmem [thread:$0]  %s354, 256, %s356, %s344, 128, 128, 8
        $region52: #{tpu_custom_call.1} parent=47 // pred_fallthru
          _
      $region48: #{tpu_custom_call.1} parent=5 // pred_fallthru
        _
      %p362 = scmp.le.s32.totalorder 1, %s24
      %p363 = scmp.lt.s32.totalorder %s24, 3
      %p364 = pnand %p362, %p363
      %p365 = pneg %p364
      // Predicated region
      $region53: #{tpu_custom_call.1} parent=5 // pred_check
        _
      $region54: #{tpu_custom_call.1} parent=5 // pred_check_branch
        %367 = sbr.rel (%p364) target = $region56
      $region55: #{tpu_custom_call.1} parent=5 // pred_region
        %s368 = ssub.s32 %s24, 1
        %s369 = sand.u32 %s37, 1
        %s370 = scalar_lea.sflag [#allocation3], %s369
        %s371 = sand.u32 %s37, 1
        %s372 = smul.addr %s371, 16
        %s373 = scalar_lea.vmem [#allocation2], %s372
        // Predicated region
        $region57: #{tpu_custom_call.1} parent=55 // pred_check
          %p374 = pneg %p50
        $region58: #{tpu_custom_call.1} parent=55 // pred_check_branch
          %376 = sbr.rel (%p374) target = $region60
        $region59: #{tpu_custom_call.1} parent=55 // pred_region
          %378 = dma.done %s370, 256
        $region60: #{tpu_custom_call.1} parent=55 // pred_fallthru
          _
        // Predicated region
        $region61: #{tpu_custom_call.1} parent=55 // pred_check
          %p379 = pneg %p71
        $region62: #{tpu_custom_call.1} parent=55 // pred_check_branch
          %381 = sbr.rel (%p379) target = $region64
        $region63: #{tpu_custom_call.1} parent=55 // pred_region
          %383 = dma.done [#allocation6], 2048
        $region64: #{tpu_custom_call.1} parent=55 // pred_fallthru
          _
        // Predicated region
        $region65: #{tpu_custom_call.1} parent=55 // pred_check
          %p384 = pneg %p92
        $region66: #{tpu_custom_call.1} parent=55 // pred_check_branch
          %386 = sbr.rel (%p384) target = $region68
        $region67: #{tpu_custom_call.1} parent=55 // pred_region
          %388 = dma.done [#allocation6], 128
        $region68: #{tpu_custom_call.1} parent=55 // pred_fallthru
          _
        // Predicated region
        $region69: #{tpu_custom_call.1} parent=55 // pred_check
          %p389 = pneg %p113
        $region70: #{tpu_custom_call.1} parent=55 // pred_check_branch
          %391 = sbr.rel (%p389) target = $region72
        $region71: #{tpu_custom_call.1} parent=55 // pred_region
          %393 = dma.done [#allocation9], 16384
        $region72: #{tpu_custom_call.1} parent=55 // pred_fallthru
          _
        // Predicated region
        $region73: #{tpu_custom_call.1} parent=55 // pred_check
          %p394 = pneg %p155
        $region74: #{tpu_custom_call.1} parent=55 // pred_check_branch
          %396 = sbr.rel (%p394) target = $region76
        $region75: #{tpu_custom_call.1} parent=55 // pred_region
          %398 = dma.done [#allocation9], 2048
        $region76: #{tpu_custom_call.1} parent=55 // pred_fallthru
          _
        // Predicated region
        $region77: #{tpu_custom_call.1} parent=55 // pred_check
          %p399 = pneg %p197
        $region78: #{tpu_custom_call.1} parent=55 // pred_check_branch
          %401 = sbr.rel (%p399) target = $region80
        $region79: #{tpu_custom_call.1} parent=55 // pred_region
          %403 = dma.done [#allocation12], 1024
        $region80: #{tpu_custom_call.1} parent=55 // pred_fallthru
          _
        %s404 = sand.u32 %s37, 1
        %s405 = scalar_lea.sflag [#allocation3], %s404
        %s406 = sand.u32 %s37, 1
        %s407 = smul.addr %s406, 16
        %s408 = scalar_lea.vmem [#allocation2], %s407
        %p409 = pneg %p50
        %p410 = pneg %p47
        %p411 = pneg %p71
        %p412 = pneg %p68
        %p413 = pneg %p92
        %p414 = pneg %p89
        %p415 = pneg %p113
        %p416 = pneg %p110
        %p417 = pneg %p134
        %p418 = pneg %p131
        %p419 = pneg %p155
        %p420 = pneg %p152
        %p421 = pneg %p176
        %p422 = pneg %p173
        %p423 = pneg %p197
        %p424 = pneg %p194
        %p425 = pneg %p218
        %p426 = pneg %p215
        %p427 = pneg %p244
        %p428 = pneg %p241
        %s429 = sand.u32 %s231, 1
        %s430 = scalar_lea.sflag [#allocation4], %s429
        %s431 = sand.u32 %s231, 1
        %s432 = smul.addr %s431, 8
        %s433 = scalar_lea.vmem [#allocation13], %s432
        %s434 = smul.u32 2, %s29
        %s435 = smul.u32 2, %s29
        %v437 = vld [vmem:[%s373] sm:$0xff]
        %v438 = vld [vmem:[%s373 + $0x8] sm:$0xff]
        %v439 = vpack.c.bf16 %v438, %v437
        %v440 = vld [vmem:[#allocation5] sm:$0xff]
        %v441 = vld [vmem:[#allocation5 + $0x8] sm:$0xff]
        %v442 = vld [vmem:[#allocation5 + $0x10] sm:$0xff]
        %v443 = vld [vmem:[#allocation5 + $0x18] sm:$0xff]
        %v444 = vld [vmem:[#allocation5 + $0x20] sm:$0xff]
        %v445 = vld [vmem:[#allocation5 + $0x28] sm:$0xff]
        %v446 = vld [vmem:[#allocation5 + $0x30] sm:$0xff]
        %v447 = vld [vmem:[#allocation5 + $0x38] sm:$0xff]
        %v448 = vld [vmem:[#allocation5 + $0x40] sm:$0xff]
        %v449 = vld [vmem:[#allocation5 + $0x48] sm:$0xff]
        %v450 = vld [vmem:[#allocation5 + $0x50] sm:$0xff]
        %v451 = vld [vmem:[#allocation5 + $0x58] sm:$0xff]
        %v452 = vld [vmem:[#allocation5 + $0x60] sm:$0xff]
        %v453 = vld [vmem:[#allocation5 + $0x68] sm:$0xff]
        %v454 = vld [vmem:[#allocation5 + $0x70] sm:$0xff]
        %v455 = vld [vmem:[#allocation5 + $0x78] sm:$0xff]
        %v456 = vld [vmem:[#allocation7] sm:$0xff]
        %v458 = vperm.slane %v456, 0
        %v459 = vperm.slane %v456, 1
        %v460 = vperm.slane %v456, 2
        %v461 = vperm.slane %v456, 3
        %v462 = vperm.slane %v456, 4
        %v463 = vperm.slane %v456, 5
        %v464 = vperm.slane %v456, 6
        %v465 = vperm.slane %v456, 7
        %v490 = vunpack.c.l.b16 %v440
        %v491 = vunpack.c.h.b16 %v440
        %v492 = vunpack.c.l.b16 %v441
        %v493 = vunpack.c.h.b16 %v441
        %v494 = vunpack.c.l.b16 %v442
        %v495 = vunpack.c.h.b16 %v442
        %v496 = vunpack.c.l.b16 %v443
        %v497 = vunpack.c.h.b16 %v443
        %v498 = vunpack.c.l.b16 %v444
        %v499 = vunpack.c.h.b16 %v444
        %v500 = vunpack.c.l.b16 %v445
        %v501 = vunpack.c.h.b16 %v445
        %v502 = vunpack.c.l.b16 %v446
        %v503 = vunpack.c.h.b16 %v446
        %v504 = vunpack.c.l.b16 %v447
        %v505 = vunpack.c.h.b16 %v447
        %v506 = vunpack.c.l.b16 %v448
        %v507 = vunpack.c.h.b16 %v448
        %v508 = vunpack.c.l.b16 %v449
        %v509 = vunpack.c.h.b16 %v449
        %v510 = vunpack.c.l.b16 %v450
        %v511 = vunpack.c.h.b16 %v450
        %v512 = vunpack.c.l.b16 %v451
        %v513 = vunpack.c.h.b16 %v451
        %v514 = vunpack.c.l.b16 %v452
        %v515 = vunpack.c.h.b16 %v452
        %v516 = vunpack.c.l.b16 %v453
        %v517 = vunpack.c.h.b16 %v453
        %v518 = vunpack.c.l.b16 %v454
        %v519 = vunpack.c.h.b16 %v454
        %v520 = vunpack.c.l.b16 %v455
        %v521 = vunpack.c.h.b16 %v455
        %v522 = vpack.c.b16 %v498, %v490
        %v523 = vpack.c.b16 %v499, %v491
        %v524 = vpack.c.b16 %v500, %v492
        %v525 = vpack.c.b16 %v501, %v493
        %v526 = vpack.c.b16 %v502, %v494
        %v527 = vpack.c.b16 %v503, %v495
        %v528 = vpack.c.b16 %v504, %v496
        %v529 = vpack.c.b16 %v505, %v497
        %v530 = vpack.c.b16 %v514, %v506
        %v531 = vpack.c.b16 %v515, %v507
        %v532 = vpack.c.b16 %v516, %v508
        %v533 = vpack.c.b16 %v517, %v509
        %v534 = vpack.c.b16 %v518, %v510
        %v535 = vpack.c.b16 %v519, %v511
        %v536 = vpack.c.b16 %v520, %v512
        %v537 = vpack.c.b16 %v521, %v513
        %vm554 = vcmask 261120
        %v556 = vsel %vm554, %v439, 0
        %558 = vmatpush.bf16.msra.mxu0 0
        %559 = vmatpush.bf16.msra.mxu0 0
        %560 = vmatpush.bf16.msra.mxu0 0
        %561 = vmatpush.bf16.msra.mxu0 0
        %562 = vmatpush.bf16.msra.mxu0 0
        %563 = vmatpush.bf16.msra.mxu0 0
        %564 = vmatpush.bf16.msra.mxu0 %v530
        %565 = vmatpush.bf16.msra.mxu0 %v522
        %566 = vmatmul.bf16.gmra.mxu0 %v556
        %v567 = vpop.f32.mrf.mxu0
        %v568 = vadd.f32 %v458, %v567
        %v569 = vpop.f32.mrf.mxu0
        %v570 = vadd.f32 %v458, %v569
        %571 = vdwg.mxu0
        %572 = vmatpush.bf16.msra.mxu0 0
        %573 = vmatpush.bf16.msra.mxu0 0
        %574 = vmatpush.bf16.msra.mxu0 0
        %575 = vmatpush.bf16.msra.mxu0 0
        %576 = vmatpush.bf16.msra.mxu0 0
        %577 = vmatpush.bf16.msra.mxu0 0
        %578 = vmatpush.bf16.msra.mxu0 %v531
        %579 = vmatpush.bf16.msra.mxu0 %v523
        %580 = vmatmul.bf16.gmra.mxu0 %v556
        %v581 = vpop.f32.mrf.mxu0
        %v582 = vadd.f32 %v459, %v581
        %v583 = vpop.f32.mrf.mxu0
        %v584 = vadd.f32 %v459, %v583
        %585 = vdwg.mxu0
        %586 = vmatpush.bf16.msra.mxu0 0
        %587 = vmatpush.bf16.msra.mxu0 0
        %588 = vmatpush.bf16.msra.mxu0 0
        %589 = vmatpush.bf16.msra.mxu0 0
        %590 = vmatpush.bf16.msra.mxu0 0
        %591 = vmatpush.bf16.msra.mxu0 0
        %592 = vmatpush.bf16.msra.mxu0 %v532
        %593 = vmatpush.bf16.msra.mxu0 %v524
        %594 = vmatmul.bf16.gmra.mxu0 %v556
        %v595 = vpop.f32.mrf.mxu0
        %v596 = vadd.f32 %v460, %v595
        %v597 = vpop.f32.mrf.mxu0
        %v598 = vadd.f32 %v460, %v597
        %599 = vdwg.mxu0
        %600 = vmatpush.bf16.msra.mxu0 0
        %601 = vmatpush.bf16.msra.mxu0 0
        %602 = vmatpush.bf16.msra.mxu0 0
        %603 = vmatpush.bf16.msra.mxu0 0
        %604 = vmatpush.bf16.msra.mxu0 0
        %605 = vmatpush.bf16.msra.mxu0 0
        %606 = vmatpush.bf16.msra.mxu0 %v533
        %607 = vmatpush.bf16.msra.mxu0 %v525
        %608 = vmatmul.bf16.gmra.mxu0 %v556
        %v609 = vpop.f32.mrf.mxu0
        %v610 = vadd.f32 %v461, %v609
        %v611 = vpop.f32.mrf.mxu0
        %v612 = vadd.f32 %v461, %v611
        %613 = vdwg.mxu0
        %614 = vmatpush.bf16.msra.mxu0 0
        %615 = vmatpush.bf16.msra.mxu0 0
        %616 = vmatpush.bf16.msra.mxu0 0
        %617 = vmatpush.bf16.msra.mxu0 0
        %618 = vmatpush.bf16.msra.mxu0 0
        %619 = vmatpush.bf16.msra.mxu0 0
        %620 = vmatpush.bf16.msra.mxu0 %v534
        %621 = vmatpush.bf16.msra.mxu0 %v526
        %622 = vmatmul.bf16.gmra.mxu0 %v556
        %v623 = vpop.f32.mrf.mxu0
        %v624 = vadd.f32 %v462, %v623
        %v625 = vpop.f32.mrf.mxu0
        %v626 = vadd.f32 %v462, %v625
        %627 = vdwg.mxu0
        %628 = vmatpush.bf16.msra.mxu0 0
        %629 = vmatpush.bf16.msra.mxu0 0
        %630 = vmatpush.bf16.msra.mxu0 0
        %631 = vmatpush.bf16.msra.mxu0 0
        %632 = vmatpush.bf16.msra.mxu0 0
        %633 = vmatpush.bf16.msra.mxu0 0
        %634 = vmatpush.bf16.msra.mxu0 %v535
        %635 = vmatpush.bf16.msra.mxu0 %v527
        %636 = vmatmul.bf16.gmra.mxu0 %v556
        %v637 = vpop.f32.mrf.mxu0
        %v638 = vadd.f32 %v463, %v637
        %v639 = vpop.f32.mrf.mxu0
        %v640 = vadd.f32 %v463, %v639
        %641 = vdwg.mxu0
        %642 = vmatpush.bf16.msra.mxu0 0
        %643 = vmatpush.bf16.msra.mxu0 0
        %644 = vmatpush.bf16.msra.mxu0 0
        %645 = vmatpush.bf16.msra.mxu0 0
        %646 = vmatpush.bf16.msra.mxu0 0
        %647 = vmatpush.bf16.msra.mxu0 0
        %648 = vmatpush.bf16.msra.mxu0 %v536
        %649 = vmatpush.bf16.msra.mxu0 %v528
        %650 = vmatmul.bf16.gmra.mxu0 %v556
        %v651 = vpop.f32.mrf.mxu0
        %v652 = vadd.f32 %v464, %v651
        %v653 = vpop.f32.mrf.mxu0
        %v654 = vadd.f32 %v464, %v653
        %655 = vdwg.mxu0
        %656 = vmatpush.bf16.msra.mxu0 0
        %657 = vmatpush.bf16.msra.mxu0 0
        %658 = vmatpush.bf16.msra.mxu0 0
        %659 = vmatpush.bf16.msra.mxu0 0
        %660 = vmatpush.bf16.msra.mxu0 0
        %661 = vmatpush.bf16.msra.mxu0 0
        %662 = vmatpush.bf16.msra.mxu0 %v537
        %663 = vmatpush.bf16.msra.mxu0 %v529
        %664 = vmatmul.bf16.gmra.mxu0 %v556
        %v665 = vpop.f32.mrf.mxu0
        %v666 = vadd.f32 %v465, %v665
        %v667 = vpop.f32.mrf.mxu0
        %v668 = vadd.f32 %v465, %v667
        %669 = vdwg.mxu0
        %v670 = vmax.f32 %v568, 0.0
        %v671 = vmax.f32 %v582, 0.0
        %v672 = vmax.f32 %v596, 0.0
        %v673 = vmax.f32 %v610, 0.0
        %v674 = vmax.f32 %v624, 0.0
        %v675 = vmax.f32 %v638, 0.0
        %v676 = vmax.f32 %v652, 0.0
        %v677 = vmax.f32 %v666, 0.0
        %v678 = vmax.f32 %v570, 0.0
        %v679 = vmax.f32 %v584, 0.0
        %v680 = vmax.f32 %v598, 0.0
        %v681 = vmax.f32 %v612, 0.0
        %v682 = vmax.f32 %v626, 0.0
        %v683 = vmax.f32 %v640, 0.0
        %v684 = vmax.f32 %v654, 0.0
        %v685 = vmax.f32 %v668, 0.0
        %v686 = vpack.c.bf16 %v678, %v670
        %v687 = vpack.c.bf16 %v679, %v671
        %v688 = vpack.c.bf16 %v680, %v672
        %v689 = vpack.c.bf16 %v681, %v673
        %v690 = vpack.c.bf16 %v682, %v674
        %v691 = vpack.c.bf16 %v683, %v675
        %v692 = vpack.c.bf16 %v684, %v676
        %v693 = vpack.c.bf16 %v685, %v677
        %v694 = vld [vmem:[#allocation8] sm:$0xff]
        %v695 = vld [vmem:[#allocation8 + $0x8] sm:$0xff]
        %v696 = vld [vmem:[#allocation8 + $0x10] sm:$0xff]
        %v697 = vld [vmem:[#allocation8 + $0x18] sm:$0xff]
        %v698 = vld [vmem:[#allocation8 + $0x20] sm:$0xff]
        %v699 = vld [vmem:[#allocation8 + $0x28] sm:$0xff]
        %v700 = vld [vmem:[#allocation8 + $0x30] sm:$0xff]
        %v701 = vld [vmem:[#allocation8 + $0x38] sm:$0xff]
        %v702 = vld [vmem:[#allocation8 + $0x40] sm:$0xff]
        %v703 = vld [vmem:[#allocation8 + $0x48] sm:$0xff]
        %v704 = vld [vmem:[#allocation8 + $0x50] sm:$0xff]
        %v705 = vld [vmem:[#allocation8 + $0x58] sm:$0xff]
        %v706 = vld [vmem:[#allocation8 + $0x60] sm:$0xff]
        %v707 = vld [vmem:[#allocation8 + $0x68] sm:$0xff]
        %v708 = vld [vmem:[#allocation8 + $0x70] sm:$0xff]
        %v709 = vld [vmem:[#allocation8 + $0x78] sm:$0xff]
        %v710 = vld [vmem:[#allocation8 + $0x80] sm:$0xff]
        %v711 = vld [vmem:[#allocation8 + $0x88] sm:$0xff]
        %v712 = vld [vmem:[#allocation8 + $0x90] sm:$0xff]
        %v713 = vld [vmem:[#allocation8 + $0x98] sm:$0xff]
        %v714 = vld [vmem:[#allocation8 + $0xa0] sm:$0xff]
        %v715 = vld [vmem:[#allocation8 + $0xa8] sm:$0xff]
        %v716 = vld [vmem:[#allocation8 + $0xb0] sm:$0xff]
        %v717 = vld [vmem:[#allocation8 + $0xb8] sm:$0xff]
        %v718 = vld [vmem:[#allocation8 + $0xc0] sm:$0xff]
        %v719 = vld [vmem:[#allocation8 + $0xc8] sm:$0xff]
        %v720 = vld [vmem:[#allocation8 + $0xd0] sm:$0xff]
        %v721 = vld [vmem:[#allocation8 + $0xd8] sm:$0xff]
        %v722 = vld [vmem:[#allocation8 + $0xe0] sm:$0xff]
        %v723 = vld [vmem:[#allocation8 + $0xe8] sm:$0xff]
        %v724 = vld [vmem:[#allocation8 + $0xf0] sm:$0xff]
        %v725 = vld [vmem:[#allocation8 + $0xf8] sm:$0xff]
        %v726 = vld [vmem:[#allocation8 + $0x100] sm:$0xff]
        %v727 = vld [vmem:[#allocation8 + $0x108] sm:$0xff]
        %v728 = vld [vmem:[#allocation8 + $0x110] sm:$0xff]
        %v729 = vld [vmem:[#allocation8 + $0x118] sm:$0xff]
        %v730 = vld [vmem:[#allocation8 + $0x120] sm:$0xff]
        %v731 = vld [vmem:[#allocation8 + $0x128] sm:$0xff]
        %v732 = vld [vmem:[#allocation8 + $0x130] sm:$0xff]
        %v733 = vld [vmem:[#allocation8 + $0x138] sm:$0xff]
        %v734 = vld [vmem:[#allocation8 + $0x140] sm:$0xff]
        %v735 = vld [vmem:[#allocation8 + $0x148] sm:$0xff]
        %v736 = vld [vmem:[#allocation8 + $0x150] sm:$0xff]
        %v737 = vld [vmem:[#allocation8 + $0x158] sm:$0xff]
        %v738 = vld [vmem:[#allocation8 + $0x160] sm:$0xff]
        %v739 = vld [vmem:[#allocation8 + $0x168] sm:$0xff]
        %v740 = vld [vmem:[#allocation8 + $0x170] sm:$0xff]
        %v741 = vld [vmem:[#allocation8 + $0x178] sm:$0xff]
        %v742 = vld [vmem:[#allocation8 + $0x180] sm:$0xff]
        %v743 = vld [vmem:[#allocation8 + $0x188] sm:$0xff]
        %v744 = vld [vmem:[#allocation8 + $0x190] sm:$0xff]
        %v745 = vld [vmem:[#allocation8 + $0x198] sm:$0xff]
        %v746 = vld [vmem:[#allocation8 + $0x1a0] sm:$0xff]
        %v747 = vld [vmem:[#allocation8 + $0x1a8] sm:$0xff]
        %v748 = vld [vmem:[#allocation8 + $0x1b0] sm:$0xff]
        %v749 = vld [vmem:[#allocation8 + $0x1b8] sm:$0xff]
        %v750 = vld [vmem:[#allocation8 + $0x1c0] sm:$0xff]
        %v751 = vld [vmem:[#allocation8 + $0x1c8] sm:$0xff]
        %v752 = vld [vmem:[#allocation8 + $0x1d0] sm:$0xff]
        %v753 = vld [vmem:[#allocation8 + $0x1d8] sm:$0xff]
        %v754 = vld [vmem:[#allocation8 + $0x1e0] sm:$0xff]
        %v755 = vld [vmem:[#allocation8 + $0x1e8] sm:$0xff]
        %v756 = vld [vmem:[#allocation8 + $0x1f0] sm:$0xff]
        %v757 = vld [vmem:[#allocation8 + $0x1f8] sm:$0xff]
        %v758 = vld [vmem:[#allocation8 + $0x200] sm:$0xff]
        %v759 = vld [vmem:[#allocation8 + $0x208] sm:$0xff]
        %v760 = vld [vmem:[#allocation8 + $0x210] sm:$0xff]
        %v761 = vld [vmem:[#allocation8 + $0x218] sm:$0xff]
        %v762 = vld [vmem:[#allocation8 + $0x220] sm:$0xff]
        %v763 = vld [vmem:[#allocation8 + $0x228] sm:$0xff]
        %v764 = vld [vmem:[#allocation8 + $0x230] sm:$0xff]
        %v765 = vld [vmem:[#allocation8 + $0x238] sm:$0xff]
        %v766 = vld [vmem:[#allocation8 + $0x240] sm:$0xff]
        %v767 = vld [vmem:[#allocation8 + $0x248] sm:$0xff]
        %v768 = vld [vmem:[#allocation8 + $0x250] sm:$0xff]
        %v769 = vld [vmem:[#allocation8 + $0x258] sm:$0xff]
        %v770 = vld [vmem:[#allocation8 + $0x260] sm:$0xff]
        %v771 = vld [vmem:[#allocation8 + $0x268] sm:$0xff]
        %v772 = vld [vmem:[#allocation8 + $0x270] sm:$0xff]
        %v773 = vld [vmem:[#allocation8 + $0x278] sm:$0xff]
        %v774 = vld [vmem:[#allocation8 + $0x280] sm:$0xff]
        %v775 = vld [vmem:[#allocation8 + $0x288] sm:$0xff]
        %v776 = vld [vmem:[#allocation8 + $0x290] sm:$0xff]
        %v777 = vld [vmem:[#allocation8 + $0x298] sm:$0xff]
        %v778 = vld [vmem:[#allocation8 + $0x2a0] sm:$0xff]
        %v779 = vld [vmem:[#allocation8 + $0x2a8] sm:$0xff]
        %v780 = vld [vmem:[#allocation8 + $0x2b0] sm:$0xff]
        %v781 = vld [vmem:[#allocation8 + $0x2b8] sm:$0xff]
        %v782 = vld [vmem:[#allocation8 + $0x2c0] sm:$0xff]
        %v783 = vld [vmem:[#allocation8 + $0x2c8] sm:$0xff]
        %v784 = vld [vmem:[#allocation8 + $0x2d0] sm:$0xff]
        %v785 = vld [vmem:[#allocation8 + $0x2d8] sm:$0xff]
        %v786 = vld [vmem:[#allocation8 + $0x2e0] sm:$0xff]
        %v787 = vld [vmem:[#allocation8 + $0x2e8] sm:$0xff]
        %v788 = vld [vmem:[#allocation8 + $0x2f0] sm:$0xff]
        %v789 = vld [vmem:[#allocation8 + $0x2f8] sm:$0xff]
        %v790 = vld [vmem:[#allocation8 + $0x300] sm:$0xff]
        %v791 = vld [vmem:[#allocation8 + $0x308] sm:$0xff]
        %v792 = vld [vmem:[#allocation8 + $0x310] sm:$0xff]
        %v793 = vld [vmem:[#allocation8 + $0x318] sm:$0xff]
        %v794 = vld [vmem:[#allocation8 + $0x320] sm:$0xff]
        %v795 = vld [vmem:[#allocation8 + $0x328] sm:$0xff]
        %v796 = vld [vmem:[#allocation8 + $0x330] sm:$0xff]
        %v797 = vld [vmem:[#allocation8 + $0x338] sm:$0xff]
        %v798 = vld [vmem:[#allocation8 + $0x340] sm:$0xff]
        %v799 = vld [vmem:[#allocation8 + $0x348] sm:$0xff]
        %v800 = vld [vmem:[#allocation8 + $0x350] sm:$0xff]
        %v801 = vld [vmem:[#allocation8 + $0x358] sm:$0xff]
        %v802 = vld [vmem:[#allocation8 + $0x360] sm:$0xff]
        %v803 = vld [vmem:[#allocation8 + $0x368] sm:$0xff]
        %v804 = vld [vmem:[#allocation8 + $0x370] sm:$0xff]
        %v805 = vld [vmem:[#allocation8 + $0x378] sm:$0xff]
        %v806 = vld [vmem:[#allocation8 + $0x380] sm:$0xff]
        %v807 = vld [vmem:[#allocation8 + $0x388] sm:$0xff]
        %v808 = vld [vmem:[#allocation8 + $0x390] sm:$0xff]
        %v809 = vld [vmem:[#allocation8 + $0x398] sm:$0xff]
        %v810 = vld [vmem:[#allocation8 + $0x3a0] sm:$0xff]
        %v811 = vld [vmem:[#allocation8 + $0x3a8] sm:$0xff]
        %v812 = vld [vmem:[#allocation8 + $0x3b0] sm:$0xff]
        %v813 = vld [vmem:[#allocation8 + $0x3b8] sm:$0xff]
        %v814 = vld [vmem:[#allocation8 + $0x3c0] sm:$0xff]
        %v815 = vld [vmem:[#allocation8 + $0x3c8] sm:$0xff]
        %v816 = vld [vmem:[#allocation8 + $0x3d0] sm:$0xff]
        %v817 = vld [vmem:[#allocation8 + $0x3d8] sm:$0xff]
        %v818 = vld [vmem:[#allocation8 + $0x3e0] sm:$0xff]
        %v819 = vld [vmem:[#allocation8 + $0x3e8] sm:$0xff]
        %v820 = vld [vmem:[#allocation8 + $0x3f0] sm:$0xff]
        %v821 = vld [vmem:[#allocation8 + $0x3f8] sm:$0xff]
        %v822 = vld [vmem:[%s4] sm:$0x3]
        %v824 = vperm.slane %v822, 0
        %v825 = vperm.slane %v822, 1
        %v956 = vunpack.c.l.b16 %v694
        %v957 = vunpack.c.h.b16 %v694
        %v958 = vunpack.c.l.b16 %v695
        %v959 = vunpack.c.h.b16 %v695
        %v960 = vunpack.c.l.b16 %v696
        %v961 = vunpack.c.h.b16 %v696
        %v962 = vunpack.c.l.b16 %v697
        %v963 = vunpack.c.h.b16 %v697
        %v964 = vunpack.c.l.b16 %v698
        %v965 = vunpack.c.h.b16 %v698
        %v966 = vunpack.c.l.b16 %v699
        %v967 = vunpack.c.h.b16 %v699
        %v968 = vunpack.c.l.b16 %v700
        %v969 = vunpack.c.h.b16 %v700
        %v970 = vunpack.c.l.b16 %v701
        %v971 = vunpack.c.h.b16 %v701
        %v972 = vunpack.c.l.b16 %v702
        %v973 = vunpack.c.h.b16 %v702
        %v974 = vunpack.c.l.b16 %v703
        %v975 = vunpack.c.h.b16 %v703
        %v976 = vunpack.c.l.b16 %v704
        %v977 = vunpack.c.h.b16 %v704
        %v978 = vunpack.c.l.b16 %v705
        %v979 = vunpack.c.h.b16 %v705
        %v980 = vunpack.c.l.b16 %v706
        %v981 = vunpack.c.h.b16 %v706
        %v982 = vunpack.c.l.b16 %v707
        %v983 = vunpack.c.h.b16 %v707
        %v984 = vunpack.c.l.b16 %v708
        %v985 = vunpack.c.h.b16 %v708
        %v986 = vunpack.c.l.b16 %v709
        %v987 = vunpack.c.h.b16 %v709
        %v988 = vunpack.c.l.b16 %v710
        %v989 = vunpack.c.h.b16 %v710
        %v990 = vunpack.c.l.b16 %v711
        %v991 = vunpack.c.h.b16 %v711
        %v992 = vunpack.c.l.b16 %v712
        %v993 = vunpack.c.h.b16 %v712
        %v994 = vunpack.c.l.b16 %v713
        %v995 = vunpack.c.h.b16 %v713
        %v996 = vunpack.c.l.b16 %v714
        %v997 = vunpack.c.h.b16 %v714
        %v998 = vunpack.c.l.b16 %v715
        %v999 = vunpack.c.h.b16 %v715
        %v1000 = vunpack.c.l.b16 %v716
        %v1001 = vunpack.c.h.b16 %v716
        %v1002 = vunpack.c.l.b16 %v717
        %v1003 = vunpack.c.h.b16 %v717
        %v1004 = vunpack.c.l.b16 %v718
        %v1005 = vunpack.c.h.b16 %v718
        %v1006 = vunpack.c.l.b16 %v719
        %v1007 = vunpack.c.h.b16 %v719
        %v1008 = vunpack.c.l.b16 %v720
        %v1009 = vunpack.c.h.b16 %v720
        %v1010 = vunpack.c.l.b16 %v721
        %v1011 = vunpack.c.h.b16 %v721
        %v1012 = vunpack.c.l.b16 %v722
        %v1013 = vunpack.c.h.b16 %v722
        %v1014 = vunpack.c.l.b16 %v723
        %v1015 = vunpack.c.h.b16 %v723
        %v1016 = vunpack.c.l.b16 %v724
        %v1017 = vunpack.c.h.b16 %v724
        %v1018 = vunpack.c.l.b16 %v725
        %v1019 = vunpack.c.h.b16 %v725
        %v1020 = vunpack.c.l.b16 %v726
        %v1021 = vunpack.c.h.b16 %v726
        %v1022 = vunpack.c.l.b16 %v727
        %v1023 = vunpack.c.h.b16 %v727
        %v1024 = vunpack.c.l.b16 %v728
        %v1025 = vunpack.c.h.b16 %v728
        %v1026 = vunpack.c.l.b16 %v729
        %v1027 = vunpack.c.h.b16 %v729
        %v1028 = vunpack.c.l.b16 %v730
        %v1029 = vunpack.c.h.b16 %v730
        %v1030 = vunpack.c.l.b16 %v731
        %v1031 = vunpack.c.h.b16 %v731
        %v1032 = vunpack.c.l.b16 %v732
        %v1033 = vunpack.c.h.b16 %v732
        %v1034 = vunpack.c.l.b16 %v733
        %v1035 = vunpack.c.h.b16 %v733
        %v1036 = vunpack.c.l.b16 %v734
        %v1037 = vunpack.c.h.b16 %v734
        %v1038 = vunpack.c.l.b16 %v735
        %v1039 = vunpack.c.h.b16 %v735
        %v1040 = vunpack.c.l.b16 %v736
        %v1041 = vunpack.c.h.b16 %v736
        %v1042 = vunpack.c.l.b16 %v737
        %v1043 = vunpack.c.h.b16 %v737
        %v1044 = vunpack.c.l.b16 %v738
        %v1045 = vunpack.c.h.b16 %v738
        %v1046 = vunpack.c.l.b16 %v739
        %v1047 = vunpack.c.h.b16 %v739
        %v1048 = vunpack.c.l.b16 %v740
        %v1049 = vunpack.c.h.b16 %v740
        %v1050 = vunpack.c.l.b16 %v741
        %v1051 = vunpack.c.h.b16 %v741
        %v1052 = vunpack.c.l.b16 %v742
        %v1053 = vunpack.c.h.b16 %v742
        %v1054 = vunpack.c.l.b16 %v743
        %v1055 = vunpack.c.h.b16 %v743
        %v1056 = vunpack.c.l.b16 %v744
        %v1057 = vunpack.c.h.b16 %v744
        %v1058 = vunpack.c.l.b16 %v745
        %v1059 = vunpack.c.h.b16 %v745
        %v1060 = vunpack.c.l.b16 %v746
        %v1061 = vunpack.c.h.b16 %v746
        %v1062 = vunpack.c.l.b16 %v747
        %v1063 = vunpack.c.h.b16 %v747
        %v1064 = vunpack.c.l.b16 %v748
        %v1065 = vunpack.c.h.b16 %v748
        %v1066 = vunpack.c.l.b16 %v749
        %v1067 = vunpack.c.h.b16 %v749
        %v1068 = vunpack.c.l.b16 %v750
        %v1069 = vunpack.c.h.b16 %v750
        %v1070 = vunpack.c.l.b16 %v751
        %v1071 = vunpack.c.h.b16 %v751
        %v1072 = vunpack.c.l.b16 %v752
        %v1073 = vunpack.c.h.b16 %v752
        %v1074 = vunpack.c.l.b16 %v753
        %v1075 = vunpack.c.h.b16 %v753
        %v1076 = vunpack.c.l.b16 %v754
        %v1077 = vunpack.c.h.b16 %v754
        %v1078 = vunpack.c.l.b16 %v755
        %v1079 = vunpack.c.h.b16 %v755
        %v1080 = vunpack.c.l.b16 %v756
        %v1081 = vunpack.c.h.b16 %v756
        %v1082 = vunpack.c.l.b16 %v757
        %v1083 = vunpack.c.h.b16 %v757
        %v1084 = vunpack.c.l.b16 %v758
        %v1085 = vunpack.c.h.b16 %v758
        %v1086 = vunpack.c.l.b16 %v759
        %v1087 = vunpack.c.h.b16 %v759
        %v1088 = vunpack.c.l.b16 %v760
        %v1089 = vunpack.c.h.b16 %v760
        %v1090 = vunpack.c.l.b16 %v761
        %v1091 = vunpack.c.h.b16 %v761
        %v1092 = vunpack.c.l.b16 %v762
        %v1093 = vunpack.c.h.b16 %v762
        %v1094 = vunpack.c.l.b16 %v763
        %v1095 = vunpack.c.h.b16 %v763
        %v1096 = vunpack.c.l.b16 %v764
        %v1097 = vunpack.c.h.b16 %v764
        %v1098 = vunpack.c.l.b16 %v765
        %v1099 = vunpack.c.h.b16 %v765
        %v1100 = vunpack.c.l.b16 %v766
        %v1101 = vunpack.c.h.b16 %v766
        %v1102 = vunpack.c.l.b16 %v767
        %v1103 = vunpack.c.h.b16 %v767
        %v1104 = vunpack.c.l.b16 %v768
        %v1105 = vunpack.c.h.b16 %v768
        %v1106 = vunpack.c.l.b16 %v769
        %v1107 = vunpack.c.h.b16 %v769
        %v1108 = vunpack.c.l.b16 %v770
        %v1109 = vunpack.c.h.b16 %v770
        %v1110 = vunpack.c.l.b16 %v771
        %v1111 = vunpack.c.h.b16 %v771
        %v1112 = vunpack.c.l.b16 %v772
        %v1113 = vunpack.c.h.b16 %v772
        %v1114 = vunpack.c.l.b16 %v773
        %v1115 = vunpack.c.h.b16 %v773
        %v1116 = vunpack.c.l.b16 %v774
        %v1117 = vunpack.c.h.b16 %v774
        %v1118 = vunpack.c.l.b16 %v775
        %v1119 = vunpack.c.h.b16 %v775
        %v1120 = vunpack.c.l.b16 %v776
        %v1121 = vunpack.c.h.b16 %v776
        %v1122 = vunpack.c.l.b16 %v777
        %v1123 = vunpack.c.h.b16 %v777
        %v1124 = vunpack.c.l.b16 %v778
        %v1125 = vunpack.c.h.b16 %v778
        %v1126 = vunpack.c.l.b16 %v779
        %v1127 = vunpack.c.h.b16 %v779
        %v1128 = vunpack.c.l.b16 %v780
        %v1129 = vunpack.c.h.b16 %v780
        %v1130 = vunpack.c.l.b16 %v781
        %v1131 = vunpack.c.h.b16 %v781
        %v1132 = vunpack.c.l.b16 %v782
        %v1133 = vunpack.c.h.b16 %v782
        %v1134 = vunpack.c.l.b16 %v783
        %v1135 = vunpack.c.h.b16 %v783
        %v1136 = vunpack.c.l.b16 %v784
        %v1137 = vunpack.c.h.b16 %v784
        %v1138 = vunpack.c.l.b16 %v785
        %v1139 = vunpack.c.h.b16 %v785
        %v1140 = vunpack.c.l.b16 %v786
        %v1141 = vunpack.c.h.b16 %v786
        %v1142 = vunpack.c.l.b16 %v787
        %v1143 = vunpack.c.h.b16 %v787
        %v1144 = vunpack.c.l.b16 %v788
        %v1145 = vunpack.c.h.b16 %v788
        %v1146 = vunpack.c.l.b16 %v789
        %v1147 = vunpack.c.h.b16 %v789
        %v1148 = vunpack.c.l.b16 %v790
        %v1149 = vunpack.c.h.b16 %v790
        %v1150 = vunpack.c.l.b16 %v791
        %v1151 = vunpack.c.h.b16 %v791
        %v1152 = vunpack.c.l.b16 %v792
        %v1153 = vunpack.c.h.b16 %v792
        %v1154 = vunpack.c.l.b16 %v793
        %v1155 = vunpack.c.h.b16 %v793
        %v1156 = vunpack.c.l.b16 %v794
        %v1157 = vunpack.c.h.b16 %v794
        %v1158 = vunpack.c.l.b16 %v795
        %v1159 = vunpack.c.h.b16 %v795
        %v1160 = vunpack.c.l.b16 %v796
        %v1161 = vunpack.c.h.b16 %v796
        %v1162 = vunpack.c.l.b16 %v797
        %v1163 = vunpack.c.h.b16 %v797
        %v1164 = vunpack.c.l.b16 %v798
        %v1165 = vunpack.c.h.b16 %v798
        %v1166 = vunpack.c.l.b16 %v799
        %v1167 = vunpack.c.h.b16 %v799
        %v1168 = vunpack.c.l.b16 %v800
        %v1169 = vunpack.c.h.b16 %v800
        %v1170 = vunpack.c.l.b16 %v801
        %v1171 = vunpack.c.h.b16 %v801
        %v1172 = vunpack.c.l.b16 %v802
        %v1173 = vunpack.c.h.b16 %v802
        %v1174 = vunpack.c.l.b16 %v803
        %v1175 = vunpack.c.h.b16 %v803
        %v1176 = vunpack.c.l.b16 %v804
        %v1177 = vunpack.c.h.b16 %v804
        %v1178 = vunpack.c.l.b16 %v805
        %v1179 = vunpack.c.h.b16 %v805
        %v1180 = vunpack.c.l.b16 %v806
        %v1181 = vunpack.c.h.b16 %v806
        %v1182 = vunpack.c.l.b16 %v807
        %v1183 = vunpack.c.h.b16 %v807
        %v1184 = vunpack.c.l.b16 %v808
        %v1185 = vunpack.c.h.b16 %v808
        %v1186 = vunpack.c.l.b16 %v809
        %v1187 = vunpack.c.h.b16 %v809
        %v1188 = vunpack.c.l.b16 %v810
        %v1189 = vunpack.c.h.b16 %v810
        %v1190 = vunpack.c.l.b16 %v811
        %v1191 = vunpack.c.h.b16 %v811
        %v1192 = vunpack.c.l.b16 %v812
        %v1193 = vunpack.c.h.b16 %v812
        %v1194 = vunpack.c.l.b16 %v813
        %v1195 = vunpack.c.h.b16 %v813
        %v1196 = vunpack.c.l.b16 %v814
        %v1197 = vunpack.c.h.b16 %v814
        %v1198 = vunpack.c.l.b16 %v815
        %v1199 = vunpack.c.h.b16 %v815
        %v1200 = vunpack.c.l.b16 %v816
        %v1201 = vunpack.c.h.b16 %v816
        %v1202 = vunpack.c.l.b16 %v817
        %v1203 = vunpack.c.h.b16 %v817
        %v1204 = vunpack.c.l.b16 %v818
        %v1205 = vunpack.c.h.b16 %v818
        %v1206 = vunpack.c.l.b16 %v819
        %v1207 = vunpack.c.h.b16 %v819
        %v1208 = vunpack.c.l.b16 %v820
        %v1209 = vunpack.c.h.b16 %v820
        %v1210 = vunpack.c.l.b16 %v821
        %v1211 = vunpack.c.h.b16 %v821
        %v1212 = vpack.c.b16 %v958, %v956
        %v1213 = vpack.c.b16 %v959, %v957
        %v1214 = vpack.c.b16 %v962, %v960
        %v1215 = vpack.c.b16 %v963, %v961
        %v1216 = vpack.c.b16 %v966, %v964
        %v1217 = vpack.c.b16 %v967, %v965
        %v1218 = vpack.c.b16 %v970, %v968
        %v1219 = vpack.c.b16 %v971, %v969
        %v1220 = vpack.c.b16 %v974, %v972
        %v1221 = vpack.c.b16 %v975, %v973
        %v1222 = vpack.c.b16 %v978, %v976
        %v1223 = vpack.c.b16 %v979, %v977
        %v1224 = vpack.c.b16 %v982, %v980
        %v1225 = vpack.c.b16 %v983, %v981
        %v1226 = vpack.c.b16 %v986, %v984
        %v1227 = vpack.c.b16 %v987, %v985
        %v1228 = vpack.c.b16 %v990, %v988
        %v1229 = vpack.c.b16 %v991, %v989
        %v1230 = vpack.c.b16 %v994, %v992
        %v1231 = vpack.c.b16 %v995, %v993
        %v1232 = vpack.c.b16 %v998, %v996
        %v1233 = vpack.c.b16 %v999, %v997
        %v1234 = vpack.c.b16 %v1002, %v1000
        %v1235 = vpack.c.b16 %v1003, %v1001
        %v1236 = vpack.c.b16 %v1006, %v1004
        %v1237 = vpack.c.b16 %v1007, %v1005
        %v1238 = vpack.c.b16 %v1010, %v1008
        %v1239 = vpack.c.b16 %v1011, %v1009
        %v1240 = vpack.c.b16 %v1014, %v1012
        %v1241 = vpack.c.b16 %v1015, %v1013
        %v1242 = vpack.c.b16 %v1018, %v1016
        %v1243 = vpack.c.b16 %v1019, %v1017
        %v1244 = vpack.c.b16 %v1022, %v1020
        %v1245 = vpack.c.b16 %v1023, %v1021
        %v1246 = vpack.c.b16 %v1026, %v1024
        %v1247 = vpack.c.b16 %v1027, %v1025
        %v1248 = vpack.c.b16 %v1030, %v1028
        %v1249 = vpack.c.b16 %v1031, %v1029
        %v1250 = vpack.c.b16 %v1034, %v1032
        %v1251 = vpack.c.b16 %v1035, %v1033
        %v1252 = vpack.c.b16 %v1038, %v1036
        %v1253 = vpack.c.b16 %v1039, %v1037
        %v1254 = vpack.c.b16 %v1042, %v1040
        %v1255 = vpack.c.b16 %v1043, %v1041
        %v1256 = vpack.c.b16 %v1046, %v1044
        %v1257 = vpack.c.b16 %v1047, %v1045
        %v1258 = vpack.c.b16 %v1050, %v1048
        %v1259 = vpack.c.b16 %v1051, %v1049
        %v1260 = vpack.c.b16 %v1054, %v1052
        %v1261 = vpack.c.b16 %v1055, %v1053
        %v1262 = vpack.c.b16 %v1058, %v1056
        %v1263 = vpack.c.b16 %v1059, %v1057
        %v1264 = vpack.c.b16 %v1062, %v1060
        %v1265 = vpack.c.b16 %v1063, %v1061
        %v1266 = vpack.c.b16 %v1066, %v1064
        %v1267 = vpack.c.b16 %v1067, %v1065
        %v1268 = vpack.c.b16 %v1070, %v1068
        %v1269 = vpack.c.b16 %v1071, %v1069
        %v1270 = vpack.c.b16 %v1074, %v1072
        %v1271 = vpack.c.b16 %v1075, %v1073
        %v1272 = vpack.c.b16 %v1078, %v1076
        %v1273 = vpack.c.b16 %v1079, %v1077
        %v1274 = vpack.c.b16 %v1082, %v1080
        %v1275 = vpack.c.b16 %v1083, %v1081
        %v1276 = vpack.c.b16 %v1086, %v1084
        %v1277 = vpack.c.b16 %v1087, %v1085
        %v1278 = vpack.c.b16 %v1090, %v1088
        %v1279 = vpack.c.b16 %v1091, %v1089
        %v1280 = vpack.c.b16 %v1094, %v1092
        %v1281 = vpack.c.b16 %v1095, %v1093
        %v1282 = vpack.c.b16 %v1098, %v1096
        %v1283 = vpack.c.b16 %v1099, %v1097
        %v1284 = vpack.c.b16 %v1102, %v1100
        %v1285 = vpack.c.b16 %v1103, %v1101
        %v1286 = vpack.c.b16 %v1106, %v1104
        %v1287 = vpack.c.b16 %v1107, %v1105
        %v1288 = vpack.c.b16 %v1110, %v1108
        %v1289 = vpack.c.b16 %v1111, %v1109
        %v1290 = vpack.c.b16 %v1114, %v1112
        %v1291 = vpack.c.b16 %v1115, %v1113
        %v1292 = vpack.c.b16 %v1118, %v1116
        %v1293 = vpack.c.b16 %v1119, %v1117
        %v1294 = vpack.c.b16 %v1122, %v1120
        %v1295 = vpack.c.b16 %v1123, %v1121
        %v1296 = vpack.c.b16 %v1126, %v1124
        %v1297 = vpack.c.b16 %v1127, %v1125
        %v1298 = vpack.c.b16 %v1130, %v1128
        %v1299 = vpack.c.b16 %v1131, %v1129
        %v1300 = vpack.c.b16 %v1134, %v1132
        %v1301 = vpack.c.b16 %v1135, %v1133
        %v1302 = vpack.c.b16 %v1138, %v1136
        %v1303 = vpack.c.b16 %v1139, %v1137
        %v1304 = vpack.c.b16 %v1142, %v1140
        %v1305 = vpack.c.b16 %v1143, %v1141
        %v1306 = vpack.c.b16 %v1146, %v1144
        %v1307 = vpack.c.b16 %v1147, %v1145
        %v1308 = vpack.c.b16 %v1150, %v1148
        %v1309 = vpack.c.b16 %v1151, %v1149
        %v1310 = vpack.c.b16 %v1154, %v1152
        %v1311 = vpack.c.b16 %v1155, %v1153
        %v1312 = vpack.c.b16 %v1158, %v1156
        %v1313 = vpack.c.b16 %v1159, %v1157
        %v1314 = vpack.c.b16 %v1162, %v1160
        %v1315 = vpack.c.b16 %v1163, %v1161
        %v1316 = vpack.c.b16 %v1166, %v1164
        %v1317 = vpack.c.b16 %v1167, %v1165
        %v1318 = vpack.c.b16 %v1170, %v1168
        %v1319 = vpack.c.b16 %v1171, %v1169
        %v1320 = vpack.c.b16 %v1174, %v1172
        %v1321 = vpack.c.b16 %v1175, %v1173
        %v1322 = vpack.c.b16 %v1178, %v1176
        %v1323 = vpack.c.b16 %v1179, %v1177
        %v1324 = vpack.c.b16 %v1182, %v1180
        %v1325 = vpack.c.b16 %v1183, %v1181
        %v1326 = vpack.c.b16 %v1186, %v1184
        %v1327 = vpack.c.b16 %v1187, %v1185
        %v1328 = vpack.c.b16 %v1190, %v1188
        %v1329 = vpack.c.b16 %v1191, %v1189
        %v1330 = vpack.c.b16 %v1194, %v1192
        %v1331 = vpack.c.b16 %v1195, %v1193
        %v1332 = vpack.c.b16 %v1198, %v1196
        %v1333 = vpack.c.b16 %v1199, %v1197
        %v1334 = vpack.c.b16 %v1202, %v1200
        %v1335 = vpack.c.b16 %v1203, %v1201
        %v1336 = vpack.c.b16 %v1206, %v1204
        %v1337 = vpack.c.b16 %v1207, %v1205
        %v1338 = vpack.c.b16 %v1210, %v1208
        %v1339 = vpack.c.b16 %v1211, %v1209
        %1468 = vmatpush.bf16.msra.mxu0 %v1226
        %1469 = vmatpush.bf16.msra.mxu0 %v1224
        %1470 = vmatpush.bf16.msra.mxu0 %v1222
        %1471 = vmatpush.bf16.msra.mxu0 %v1220
        %1472 = vmatpush.bf16.msra.mxu0 %v1218
        %1473 = vmatpush.bf16.msra.mxu0 %v1216
        %1474 = vmatpush.bf16.msra.mxu0 %v1214
        %1475 = vmatpush.bf16.msra.mxu0 %v1212
        %1476 = vmatmul.bf16.gmra.mxu0 %v686
        %v1477 = vpop.f32.mrf.mxu0
        %v1478 = vadd.f32 %v824, %v1477
        %v1479 = vpop.f32.mrf.mxu0
        %v1480 = vadd.f32 %v824, %v1479
        %1481 = vdwg.mxu0
        %1482 = vmatpush.bf16.msra.mxu0 %v1242
        %1483 = vmatpush.bf16.msra.mxu0 %v1240
        %1484 = vmatpush.bf16.msra.mxu0 %v1238
        %1485 = vmatpush.bf16.msra.mxu0 %v1236
        %1486 = vmatpush.bf16.msra.mxu0 %v1234
        %1487 = vmatpush.bf16.msra.mxu0 %v1232
        %1488 = vmatpush.bf16.msra.mxu0 %v1230
        %1489 = vmatpush.bf16.msra.mxu0 %v1228
        %1490 = vmatmul.bf16.gmra.mxu0 %v687
        %v1491 = vpop.f32.mrf.mxu0
        %v1492 = vadd.f32 %v1478, %v1491
        %v1493 = vpop.f32.mrf.mxu0
        %v1494 = vadd.f32 %v1480, %v1493
        %1495 = vdwg.mxu0
        %1496 = vmatpush.bf16.msra.mxu0 %v1258
        %1497 = vmatpush.bf16.msra.mxu0 %v1256
        %1498 = vmatpush.bf16.msra.mxu0 %v1254
        %1499 = vmatpush.bf16.msra.mxu0 %v1252
        %1500 = vmatpush.bf16.msra.mxu0 %v1250
        %1501 = vmatpush.bf16.msra.mxu0 %v1248
        %1502 = vmatpush.bf16.msra.mxu0 %v1246
        %1503 = vmatpush.bf16.msra.mxu0 %v1244
        %1504 = vmatmul.bf16.gmra.mxu0 %v688
        %v1505 = vpop.f32.mrf.mxu0
        %v1506 = vadd.f32 %v1492, %v1505
        %v1507 = vpop.f32.mrf.mxu0
        %v1508 = vadd.f32 %v1494, %v1507
        %1509 = vdwg.mxu0
        %1510 = vmatpush.bf16.msra.mxu0 %v1274
        %1511 = vmatpush.bf16.msra.mxu0 %v1272
        %1512 = vmatpush.bf16.msra.mxu0 %v1270
        %1513 = vmatpush.bf16.msra.mxu0 %v1268
        %1514 = vmatpush.bf16.msra.mxu0 %v1266
        %1515 = vmatpush.bf16.msra.mxu0 %v1264
        %1516 = vmatpush.bf16.msra.mxu0 %v1262
        %1517 = vmatpush.bf16.msra.mxu0 %v1260
        %1518 = vmatmul.bf16.gmra.mxu0 %v689
        %v1519 = vpop.f32.mrf.mxu0
        %v1520 = vadd.f32 %v1506, %v1519
        %v1521 = vpop.f32.mrf.mxu0
        %v1522 = vadd.f32 %v1508, %v1521
        %1523 = vdwg.mxu0
        %1524 = vmatpush.bf16.msra.mxu0 %v1290
        %1525 = vmatpush.bf16.msra.mxu0 %v1288
        %1526 = vmatpush.bf16.msra.mxu0 %v1286
        %1527 = vmatpush.bf16.msra.mxu0 %v1284
        %1528 = vmatpush.bf16.msra.mxu0 %v1282
        %1529 = vmatpush.bf16.msra.mxu0 %v1280
        %1530 = vmatpush.bf16.msra.mxu0 %v1278
        %1531 = vmatpush.bf16.msra.mxu0 %v1276
        %1532 = vmatmul.bf16.gmra.mxu0 %v690
        %v1533 = vpop.f32.mrf.mxu0
        %v1534 = vadd.f32 %v1520, %v1533
        %v1535 = vpop.f32.mrf.mxu0
        %v1536 = vadd.f32 %v1522, %v1535
        %1537 = vdwg.mxu0
        %1538 = vmatpush.bf16.msra.mxu0 %v1306
        %1539 = vmatpush.bf16.msra.mxu0 %v1304
        %1540 = vmatpush.bf16.msra.mxu0 %v1302
        %1541 = vmatpush.bf16.msra.mxu0 %v1300
        %1542 = vmatpush.bf16.msra.mxu0 %v1298
        %1543 = vmatpush.bf16.msra.mxu0 %v1296
        %1544 = vmatpush.bf16.msra.mxu0 %v1294
        %1545 = vmatpush.bf16.msra.mxu0 %v1292
        %1546 = vmatmul.bf16.gmra.mxu0 %v691
        %v1547 = vpop.f32.mrf.mxu0
        %v1548 = vadd.f32 %v1534, %v1547
        %v1549 = vpop.f32.mrf.mxu0
        %v1550 = vadd.f32 %v1536, %v1549
        %1551 = vdwg.mxu0
        %1552 = vmatpush.bf16.msra.mxu0 %v1322
        %1553 = vmatpush.bf16.msra.mxu0 %v1320
        %1554 = vmatpush.bf16.msra.mxu0 %v1318
        %1555 = vmatpush.bf16.msra.mxu0 %v1316
        %1556 = vmatpush.bf16.msra.mxu0 %v1314
        %1557 = vmatpush.bf16.msra.mxu0 %v1312
        %1558 = vmatpush.bf16.msra.mxu0 %v1310
        %1559 = vmatpush.bf16.msra.mxu0 %v1308
        %1560 = vmatmul.bf16.gmra.mxu0 %v692
        %v1561 = vpop.f32.mrf.mxu0
        %v1562 = vadd.f32 %v1548, %v1561
        %v1563 = vpop.f32.mrf.mxu0
        %v1564 = vadd.f32 %v1550, %v1563
        %1565 = vdwg.mxu0
        %1566 = vmatpush.bf16.msra.mxu0 %v1338
        %1567 = vmatpush.bf16.msra.mxu0 %v1336
        %1568 = vmatpush.bf16.msra.mxu0 %v1334
        %1569 = vmatpush.bf16.msra.mxu0 %v1332
        %1570 = vmatpush.bf16.msra.mxu0 %v1330
        %1571 = vmatpush.bf16.msra.mxu0 %v1328
        %1572 = vmatpush.bf16.msra.mxu0 %v1326
        %1573 = vmatpush.bf16.msra.mxu0 %v1324
        %1574 = vmatmul.bf16.gmra.mxu0 %v693
        %v1575 = vpop.f32.mrf.mxu0
        %v1576 = vadd.f32 %v1562, %v1575
        %v1577 = vpop.f32.mrf.mxu0
        %v1578 = vadd.f32 %v1564, %v1577
        %1579 = vdwg.mxu0
        %1580 = vmatpush.bf16.msra.mxu0 %v1227
        %1581 = vmatpush.bf16.msra.mxu0 %v1225
        %1582 = vmatpush.bf16.msra.mxu0 %v1223
        %1583 = vmatpush.bf16.msra.mxu0 %v1221
        %1584 = vmatpush.bf16.msra.mxu0 %v1219
        %1585 = vmatpush.bf16.msra.mxu0 %v1217
        %1586 = vmatpush.bf16.msra.mxu0 %v1215
        %1587 = vmatpush.bf16.msra.mxu0 %v1213
        %1588 = vmatmul.bf16.gmra.mxu0 %v686
        %v1589 = vpop.f32.mrf.mxu0
        %v1590 = vadd.f32 %v825, %v1589
        %v1591 = vpop.f32.mrf.mxu0
        %v1592 = vadd.f32 %v825, %v1591
        %1593 = vdwg.mxu0
        %1594 = vmatpush.bf16.msra.mxu0 %v1243
        %1595 = vmatpush.bf16.msra.mxu0 %v1241
        %1596 = vmatpush.bf16.msra.mxu0 %v1239
        %1597 = vmatpush.bf16.msra.mxu0 %v1237
        %1598 = vmatpush.bf16.msra.mxu0 %v1235
        %1599 = vmatpush.bf16.msra.mxu0 %v1233
        %1600 = vmatpush.bf16.msra.mxu0 %v1231
        %1601 = vmatpush.bf16.msra.mxu0 %v1229
        %1602 = vmatmul.bf16.gmra.mxu0 %v687
        %v1603 = vpop.f32.mrf.mxu0
        %v1604 = vadd.f32 %v1590, %v1603
        %v1605 = vpop.f32.mrf.mxu0
        %v1606 = vadd.f32 %v1592, %v1605
        %1607 = vdwg.mxu0
        %1608 = vmatpush.bf16.msra.mxu0 %v1259
        %1609 = vmatpush.bf16.msra.mxu0 %v1257
        %1610 = vmatpush.bf16.msra.mxu0 %v1255
        %1611 = vmatpush.bf16.msra.mxu0 %v1253
        %1612 = vmatpush.bf16.msra.mxu0 %v1251
        %1613 = vmatpush.bf16.msra.mxu0 %v1249
        %1614 = vmatpush.bf16.msra.mxu0 %v1247
        %1615 = vmatpush.bf16.msra.mxu0 %v1245
        %1616 = vmatmul.bf16.gmra.mxu0 %v688
        %v1617 = vpop.f32.mrf.mxu0
        %v1618 = vadd.f32 %v1604, %v1617
        %v1619 = vpop.f32.mrf.mxu0
        %v1620 = vadd.f32 %v1606, %v1619
        %1621 = vdwg.mxu0
        %1622 = vmatpush.bf16.msra.mxu0 %v1275
        %1623 = vmatpush.bf16.msra.mxu0 %v1273
        %1624 = vmatpush.bf16.msra.mxu0 %v1271
        %1625 = vmatpush.bf16.msra.mxu0 %v1269
        %1626 = vmatpush.bf16.msra.mxu0 %v1267
        %1627 = vmatpush.bf16.msra.mxu0 %v1265
        %1628 = vmatpush.bf16.msra.mxu0 %v1263
        %1629 = vmatpush.bf16.msra.mxu0 %v1261
        %1630 = vmatmul.bf16.gmra.mxu0 %v689
        %v1631 = vpop.f32.mrf.mxu0
        %v1632 = vadd.f32 %v1618, %v1631
        %v1633 = vpop.f32.mrf.mxu0
        %v1634 = vadd.f32 %v1620, %v1633
        %1635 = vdwg.mxu0
        %1636 = vmatpush.bf16.msra.mxu0 %v1291
        %1637 = vmatpush.bf16.msra.mxu0 %v1289
        %1638 = vmatpush.bf16.msra.mxu0 %v1287
        %1639 = vmatpush.bf16.msra.mxu0 %v1285
        %1640 = vmatpush.bf16.msra.mxu0 %v1283
        %1641 = vmatpush.bf16.msra.mxu0 %v1281
        %1642 = vmatpush.bf16.msra.mxu0 %v1279
        %1643 = vmatpush.bf16.msra.mxu0 %v1277
        %1644 = vmatmul.bf16.gmra.mxu0 %v690
        %v1645 = vpop.f32.mrf.mxu0
        %v1646 = vadd.f32 %v1632, %v1645
        %v1647 = vpop.f32.mrf.mxu0
        %v1648 = vadd.f32 %v1634, %v1647
        %1649 = vdwg.mxu0
        %1650 = vmatpush.bf16.msra.mxu0 %v1307
        %1651 = vmatpush.bf16.msra.mxu0 %v1305
        %1652 = vmatpush.bf16.msra.mxu0 %v1303
        %1653 = vmatpush.bf16.msra.mxu0 %v1301
        %1654 = vmatpush.bf16.msra.mxu0 %v1299
        %1655 = vmatpush.bf16.msra.mxu0 %v1297
        %1656 = vmatpush.bf16.msra.mxu0 %v1295
        %1657 = vmatpush.bf16.msra.mxu0 %v1293
        %1658 = vmatmul.bf16.gmra.mxu0 %v691
        %v1659 = vpop.f32.mrf.mxu0
        %v1660 = vadd.f32 %v1646, %v1659
        %v1661 = vpop.f32.mrf.mxu0
        %v1662 = vadd.f32 %v1648, %v1661
        %1663 = vdwg.mxu0
        %1664 = vmatpush.bf16.msra.mxu0 %v1323
        %1665 = vmatpush.bf16.msra.mxu0 %v1321
        %1666 = vmatpush.bf16.msra.mxu0 %v1319
        %1667 = vmatpush.bf16.msra.mxu0 %v1317
        %1668 = vmatpush.bf16.msra.mxu0 %v1315
        %1669 = vmatpush.bf16.msra.mxu0 %v1313
        %1670 = vmatpush.bf16.msra.mxu0 %v1311
        %1671 = vmatpush.bf16.msra.mxu0 %v1309
        %1672 = vmatmul.bf16.gmra.mxu0 %v692
        %v1673 = vpop.f32.mrf.mxu0
        %v1674 = vadd.f32 %v1660, %v1673
        %v1675 = vpop.f32.mrf.mxu0
        %v1676 = vadd.f32 %v1662, %v1675
        %1677 = vdwg.mxu0
        %1678 = vmatpush.bf16.msra.mxu0 %v1339
        %1679 = vmatpush.bf16.msra.mxu0 %v1337
        %1680 = vmatpush.bf16.msra.mxu0 %v1335
        %1681 = vmatpush.bf16.msra.mxu0 %v1333
        %1682 = vmatpush.bf16.msra.mxu0 %v1331
        %1683 = vmatpush.bf16.msra.mxu0 %v1329
        %1684 = vmatpush.bf16.msra.mxu0 %v1327
        %1685 = vmatpush.bf16.msra.mxu0 %v1325
        %1686 = vmatmul.bf16.gmra.mxu0 %v693
        %v1687 = vpop.f32.mrf.mxu0
        %v1688 = vadd.f32 %v1674, %v1687
        %v1689 = vpop.f32.mrf.mxu0
        %v1690 = vadd.f32 %v1676, %v1689
        %1691 = vdwg.mxu0
        %v1692 = vmax.f32 %v1576, 0.0
        %v1693 = vmax.f32 %v1688, 0.0
        %v1694 = vmax.f32 %v1578, 0.0
        %v1695 = vmax.f32 %v1690, 0.0
        %v1696 = vpack.c.bf16 %v1694, %v1692
        %v1697 = vpack.c.bf16 %v1695, %v1693
        %v1698 = vld [vmem:[#allocation10] sm:$0xf]
        %v1699 = vld [vmem:[#allocation10 + $0x4] sm:$0xf]
        %v1700 = vld [vmem:[#allocation10 + $0x8] sm:$0xf]
        %v1701 = vld [vmem:[#allocation10 + $0xc] sm:$0xf]
        %v1702 = vld [vmem:[#allocation10 + $0x10] sm:$0xf]
        %v1703 = vld [vmem:[#allocation10 + $0x14] sm:$0xf]
        %v1704 = vld [vmem:[#allocation10 + $0x18] sm:$0xf]
        %v1705 = vld [vmem:[#allocation10 + $0x1c] sm:$0xf]
        %v1706 = vld [vmem:[#allocation10 + $0x20] sm:$0xf]
        %v1707 = vld [vmem:[#allocation10 + $0x24] sm:$0xf]
        %v1708 = vld [vmem:[#allocation10 + $0x28] sm:$0xf]
        %v1709 = vld [vmem:[#allocation10 + $0x2c] sm:$0xf]
        %v1710 = vld [vmem:[#allocation10 + $0x30] sm:$0xf]
        %v1711 = vld [vmem:[#allocation10 + $0x34] sm:$0xf]
        %v1712 = vld [vmem:[#allocation10 + $0x38] sm:$0xf]
        %v1713 = vld [vmem:[#allocation10 + $0x3c] sm:$0xf]
        %v1714 = vld [vmem:[#allocation10 + $0x40] sm:$0xf]
        %v1715 = vld [vmem:[#allocation10 + $0x44] sm:$0xf]
        %v1716 = vld [vmem:[#allocation10 + $0x48] sm:$0xf]
        %v1717 = vld [vmem:[#allocation10 + $0x4c] sm:$0xf]
        %v1718 = vld [vmem:[#allocation10 + $0x50] sm:$0xf]
        %v1719 = vld [vmem:[#allocation10 + $0x54] sm:$0xf]
        %v1720 = vld [vmem:[#allocation10 + $0x58] sm:$0xf]
        %v1721 = vld [vmem:[#allocation10 + $0x5c] sm:$0xf]
        %v1722 = vld [vmem:[#allocation10 + $0x60] sm:$0xf]
        %v1723 = vld [vmem:[#allocation10 + $0x64] sm:$0xf]
        %v1724 = vld [vmem:[#allocation10 + $0x68] sm:$0xf]
        %v1725 = vld [vmem:[#allocation10 + $0x6c] sm:$0xf]
        %v1726 = vld [vmem:[#allocation10 + $0x70] sm:$0xf]
        %v1727 = vld [vmem:[#allocation10 + $0x74] sm:$0xf]
        %v1728 = vld [vmem:[#allocation10 + $0x78] sm:$0xf]
        %v1729 = vld [vmem:[#allocation10 + $0x7c] sm:$0xf]
        %v1730 = vld [vmem:[%s6] sm:$0x1]
        %v1732 = vperm.slane %v1730, 0
        %v1766 = vunpack.c.l.b16 %v1698
        %v1767 = vunpack.c.l.b16 %v1699
        %v1768 = vunpack.c.l.b16 %v1700
        %v1769 = vunpack.c.l.b16 %v1701
        %v1770 = vunpack.c.l.b16 %v1702
        %v1771 = vunpack.c.l.b16 %v1703
        %v1772 = vunpack.c.l.b16 %v1704
        %v1773 = vunpack.c.l.b16 %v1705
        %v1774 = vunpack.c.l.b16 %v1706
        %v1775 = vunpack.c.l.b16 %v1707
        %v1776 = vunpack.c.l.b16 %v1708
        %v1777 = vunpack.c.l.b16 %v1709
        %v1778 = vunpack.c.l.b16 %v1710
        %v1779 = vunpack.c.l.b16 %v1711
        %v1780 = vunpack.c.l.b16 %v1712
        %v1781 = vunpack.c.l.b16 %v1713
        %v1782 = vunpack.c.l.b16 %v1714
        %v1783 = vunpack.c.l.b16 %v1715
        %v1784 = vunpack.c.l.b16 %v1716
        %v1785 = vunpack.c.l.b16 %v1717
        %v1786 = vunpack.c.l.b16 %v1718
        %v1787 = vunpack.c.l.b16 %v1719
        %v1788 = vunpack.c.l.b16 %v1720
        %v1789 = vunpack.c.l.b16 %v1721
        %v1790 = vunpack.c.l.b16 %v1722
        %v1791 = vunpack.c.l.b16 %v1723
        %v1792 = vunpack.c.l.b16 %v1724
        %v1793 = vunpack.c.l.b16 %v1725
        %v1794 = vunpack.c.l.b16 %v1726
        %v1795 = vunpack.c.l.b16 %v1727
        %v1796 = vunpack.c.l.b16 %v1728
        %v1797 = vunpack.c.l.b16 %v1729
        %v1798 = vpack.c.b16 %v1767, %v1766
        %v1799 = vpack.c.b16 %v1769, %v1768
        %v1800 = vpack.c.b16 %v1771, %v1770
        %v1801 = vpack.c.b16 %v1773, %v1772
        %v1802 = vpack.c.b16 %v1775, %v1774
        %v1803 = vpack.c.b16 %v1777, %v1776
        %v1804 = vpack.c.b16 %v1779, %v1778
        %v1805 = vpack.c.b16 %v1781, %v1780
        %v1806 = vpack.c.b16 %v1783, %v1782
        %v1807 = vpack.c.b16 %v1785, %v1784
        %v1808 = vpack.c.b16 %v1787, %v1786
        %v1809 = vpack.c.b16 %v1789, %v1788
        %v1810 = vpack.c.b16 %v1791, %v1790
        %v1811 = vpack.c.b16 %v1793, %v1792
        %v1812 = vpack.c.b16 %v1795, %v1794
        %v1813 = vpack.c.b16 %v1797, %v1796
        %1830 = vmatpush.bf16.msra.mxu0 %v1805
        %1831 = vmatpush.bf16.msra.mxu0 %v1804
        %1832 = vmatpush.bf16.msra.mxu0 %v1803
        %1833 = vmatpush.bf16.msra.mxu0 %v1802
        %1834 = vmatpush.bf16.msra.mxu0 %v1801
        %1835 = vmatpush.bf16.msra.mxu0 %v1800
        %1836 = vmatpush.bf16.msra.mxu0 %v1799
        %1837 = vmatpush.bf16.msra.mxu0 %v1798
        %1838 = vmatmul.bf16.gmra.mxu0 %v1696
        %v1839 = vpop.f32.mrf.mxu0
        %v1840 = vadd.f32 %v1732, %v1839
        %v1841 = vpop.f32.mrf.mxu0
        %v1842 = vadd.f32 %v1732, %v1841
        %1843 = vdwg.mxu0
        %1844 = vmatpush.bf16.msra.mxu0 %v1813
        %1845 = vmatpush.bf16.msra.mxu0 %v1812
        %1846 = vmatpush.bf16.msra.mxu0 %v1811
        %1847 = vmatpush.bf16.msra.mxu0 %v1810
        %1848 = vmatpush.bf16.msra.mxu0 %v1809
        %1849 = vmatpush.bf16.msra.mxu0 %v1808
        %1850 = vmatpush.bf16.msra.mxu0 %v1807
        %1851 = vmatpush.bf16.msra.mxu0 %v1806
        %1852 = vmatmul.bf16.gmra.mxu0 %v1697
        %v1853 = vpop.f32.mrf.mxu0
        %v1854 = vadd.f32 %v1840, %v1853
        %v1855 = vpop.f32.mrf.mxu0
        %v1856 = vadd.f32 %v1842, %v1855
        %1857 = vdwg.mxu0
        %v1858 = vmax.f32 %v1854, 0.0
        %v1859 = vmax.f32 %v1856, 0.0
        %v1860 = vpack.c.bf16 %v1859, %v1858
        %v1861 = vld [vmem:[#allocation11] sm:$0xf]
        %v1862 = vld [vmem:[#allocation11 + $0x4] sm:$0xf]
        %v1863 = vld [vmem:[#allocation11 + $0x8] sm:$0xf]
        %v1864 = vld [vmem:[#allocation11 + $0xc] sm:$0xf]
        %v1865 = vld [vmem:[#allocation11 + $0x10] sm:$0xf]
        %v1866 = vld [vmem:[#allocation11 + $0x14] sm:$0xf]
        %v1867 = vld [vmem:[#allocation11 + $0x18] sm:$0xf]
        %v1868 = vld [vmem:[#allocation11 + $0x1c] sm:$0xf]
        %v1869 = vld [vmem:[#allocation11 + $0x20] sm:$0xf]
        %v1870 = vld [vmem:[#allocation11 + $0x24] sm:$0xf]
        %v1871 = vld [vmem:[#allocation11 + $0x28] sm:$0xf]
        %v1872 = vld [vmem:[#allocation11 + $0x2c] sm:$0xf]
        %v1873 = vld [vmem:[#allocation11 + $0x30] sm:$0xf]
        %v1874 = vld [vmem:[#allocation11 + $0x34] sm:$0xf]
        %v1875 = vld [vmem:[#allocation11 + $0x38] sm:$0xf]
        %v1876 = vld [vmem:[#allocation11 + $0x3c] sm:$0xf]
        %v1877 = vld [vmem:[%s8] sm:$0x1]
        %v1879 = vperm.slane %v1877, 0
        %v1897 = vunpack.c.l.b16 %v1861
        %v1898 = vunpack.c.l.b16 %v1862
        %v1899 = vunpack.c.l.b16 %v1863
        %v1900 = vunpack.c.l.b16 %v1864
        %v1901 = vunpack.c.l.b16 %v1865
        %v1902 = vunpack.c.l.b16 %v1866
        %v1903 = vunpack.c.l.b16 %v1867
        %v1904 = vunpack.c.l.b16 %v1868
        %v1905 = vunpack.c.l.b16 %v1869
        %v1906 = vunpack.c.l.b16 %v1870
        %v1907 = vunpack.c.l.b16 %v1871
        %v1908 = vunpack.c.l.b16 %v1872
        %v1909 = vunpack.c.l.b16 %v1873
        %v1910 = vunpack.c.l.b16 %v1874
        %v1911 = vunpack.c.l.b16 %v1875
        %v1912 = vunpack.c.l.b16 %v1876
        %v1913 = vpack.c.b16 %v1898, %v1897
        %v1914 = vpack.c.b16 %v1900, %v1899
        %v1915 = vpack.c.b16 %v1902, %v1901
        %v1916 = vpack.c.b16 %v1904, %v1903
        %v1917 = vpack.c.b16 %v1906, %v1905
        %v1918 = vpack.c.b16 %v1908, %v1907
        %v1919 = vpack.c.b16 %v1910, %v1909
        %v1920 = vpack.c.b16 %v1912, %v1911
        %1929 = vmatpush.bf16.msra.mxu0 %v1920
        %1930 = vmatpush.bf16.msra.mxu0 %v1919
        %1931 = vmatpush.bf16.msra.mxu0 %v1918
        %1932 = vmatpush.bf16.msra.mxu0 %v1917
        %1933 = vmatpush.bf16.msra.mxu0 %v1916
        %1934 = vmatpush.bf16.msra.mxu0 %v1915
        %1935 = vmatpush.bf16.msra.mxu0 %v1914
        %1936 = vmatpush.bf16.msra.mxu0 %v1913
        %1937 = vmatmul.bf16.gmra.mxu0 %v1860
        %v1938 = vpop.f32.mrf.mxu0
        %v1939 = vadd.f32 %v1879, %v1938
        %v1940 = vpop.f32.mrf.mxu0
        %v1941 = vadd.f32 %v1879, %v1940
        %1942 = vdwg.mxu0
        %v1943 = vpack.c.bf16 %v1939, %v1939
        %v1944 = vpack.c.bf16 %v1941, %v1941
        %1945 = vst [vmem:[%s433] sm:$0xf] %v1943
        %1946 = vst [vmem:[%s433 + $0x4] sm:$0xf] %v1944
        %s1947 = sand.u32 %s231, 1
        %s1948 = scalar_lea.sflag [#allocation4], %s1947
        %s1949 = sand.u32 %s231, 1
        %s1950 = smul.addr %s1949, 8
        %s1951 = scalar_lea.vmem [#allocation13], %s1950
        // Predicated region
        $region81: #{tpu_custom_call.1} parent=55 // pred_check
          %p1952 = pneg %p241
        $region82: #{tpu_custom_call.1} parent=55 // pred_check_branch
          %1954 = sbr.rel (%p1952) target = $region84
        $region83: #{tpu_custom_call.1} parent=55 // pred_region
          %s1955 = smul.u32 2, %s29
          %1957 = vsyncadd %s1948, 0
          %s1958 = smul.addr %s1955, 4
          %s1959 = scalar_lea.hbm %s9, %s1958
          %s1960 = sshll.u32 %s1951, 4
          %s1961 = int_to_ptr.vmem [resolvable:$true] %s1960
          %s1962 = sshll.u32 %s1959, 4
          %s1963 = int_to_ptr.hbm [resolvable:$true] %s1962
          %1968 = dma.vmem_to_hbm [thread:$0]  %s1961, 128, %s1963, %s1948, 64, 64, 4
        $region84: #{tpu_custom_call.1} parent=55 // pred_fallthru
          _
      $region56: #{tpu_custom_call.1} parent=5 // pred_fallthru
        _
      %p1969 = scmp.le.s32.totalorder 2, %s24
      // Predicated region
      $region85: #{tpu_custom_call.1} parent=5 // pred_check
        %p1970 = pneg %p1969
      $region86: #{tpu_custom_call.1} parent=5 // pred_check_branch
        %1972 = sbr.rel (%p1970) target = $region88
      $region87: #{tpu_custom_call.1} parent=5 // pred_region
        %s1973 = ssub.s32 %s24, 2
        // Predicated region
        $region89: #{tpu_custom_call.1} parent=87 // pred_check
          %p1974 = pneg %p247
        $region90: #{tpu_custom_call.1} parent=87 // pred_check_branch
          %1976 = sbr.rel (%p1974) target = $region92
        $region91: #{tpu_custom_call.1} parent=87 // pred_region
          %s1977 = sand.u32 %s232, 1
          %s1978 = scalar_lea.sflag [#allocation4], %s1977
          %s1979 = sand.u32 %s232, 1
          %s1980 = smul.addr %s1979, 8
          %s1981 = scalar_lea.vmem [#allocation13], %s1980
          %1983 = dma.done %s1978, 128
        $region92: #{tpu_custom_call.1} parent=87 // pred_fallthru
          _
      $region88: #{tpu_custom_call.1} parent=5 // pred_fallthru
        _
    $region6: #{tpu_custom_call.1} parent=1 // loop_footer
      %s28 = sadd.s32 1, %s24
    $region7: #{tpu_custom_call.1} parent=1 // loop_footer_branch
      %23 = sbr.rel target = $region3
    $region8: #{tpu_custom_call.1} parent=1 // loop_exit
      _
    %1984 = vsyncpa [#allocation3], 1
    %s1985 = scalar_lea.sflag [#allocation3], 1
    %1986 = vsyncpa %s1985, 1
    %1987 = vsyncpa [#allocation6], 1
    %1988 = vsyncpa [#allocation9], 1
    %1989 = vsyncpa [#allocation12], 1
    %1990 = vsyncpa [#allocation4], 1
    %s1991 = scalar_lea.sflag [#allocation4], 1
    %1992 = vsyncpa %s1991, 1

</llo_original>
